<compile_context>
chip_gen: v6e
topology: v6e:2x2x1
jax: 0.10.0
libtpu: 0.0.40
codegen_flags: <defaults>
</compile_context>

<pallas_src>
from functools import partial

import jax
import jax.numpy as jnp
from jax.experimental import pallas as pl
from jax.experimental.pallas import tpu as pltpu


# ------------------------------ kernel bodies --------------------------------


def _butterfly(x):
    """x: (4, oc, th, W) f32, already scaled by 0.5.

    Returns the four output parity planes using 8 VALU ops instead of 12."""
    x1, x2, x3, x4 = x[0], x[1], x[2], x[3]
    s12 = x1 + x2
    d12 = x1 - x2
    s34 = x3 + x4
    d34 = x3 - x4
    a = d12 - d34   # h[0::2, 0::2] = x1 - x2 - x3 + x4
    b = d12 + d34   # h[1::2, 0::2] = x1 - x2 + x3 - x4
    c = s12 - s34   # h[0::2, 1::2] = x1 + x2 - x3 - x4
    d = s12 + s34   # h[1::2, 1::2] = x1 + x2 + x3 + x4
    return a, b, c, d


def _iwt_fused_kernel(x_ref, o_ref):
    # x_ref: (1, 4, oc, th, W) input dtype; o_ref: (1, oc, th, 4*W) f32.
    # Output-block row i packs [output row 2i | output row 2i+1] along lanes;
    # the wrapper reshape (B, oc, H, 4W) -> (B, oc, 2H, 2W) undoes it for free.
    x = x_ref[0].astype(jnp.float32) * 0.5          # upcast in VMEM, not HBM
    a, b, c, d = _butterfly(x)
    oc, th, w = a.shape
    # Column (lane) interleave only; XLU work hidden under the HBM DMA stream.
    even_rows = jnp.stack([a, c], axis=-1).reshape(oc, th, 2 * w)
    odd_rows = jnp.stack([b, d], axis=-1).reshape(oc, th, 2 * w)
    # Direct slice stores into the (sublane-dense, lane-dense) output block:
    # no full-tile row-interleave temporary, no extra full-tile copy.
    o_ref[0, :, :, 0:2 * w] = even_rows
    o_ref[0, :, :, 2 * w:4 * w] = odd_rows


def _iwt_split_kernel(x_ref, a_ref, b_ref, c_ref, d_ref):
    # Fallback: emit the four parity planes; interleave is done by XLA outside.
    x = x_ref[0].astype(jnp.float32) * 0.5
    a, b, c, d = _butterfly(x)
    a_ref[0] = a
    b_ref[0] = b
    c_ref[0] = c
    d_ref[0] = d


# ------------------------------ tiling helpers --------------------------------


def _vmem_caps():
    """(physical VMEM bytes, per-step tile budget) for this generation."""
    try:
        cap = int(pltpu.get_tpu_info().vmem_capacity_bytes)
    except Exception:
        cap = 64 << 20                       # conservative: v7x per-TC VMEM
    # v7x-class (<=64 MiB physical) gets a smaller budget than v5e/v6e (128 MiB).
    tile_budget = (24 << 20) if cap <= (64 << 20) else (48 << 20)
    return cap, tile_budget


def _pick_h_tile(H, bytes_per_row, budget, n_outer, min_steps=8):
    """Largest H tile (multiple of 8, dividing H) whose full double-buffered
    per-step footprint fits `budget`, shrunk if needed so there are at least
    ~`min_steps` grid steps (keeps v7x's two TensorCores and the DMA pipeline
    busy).  Falls back to the full extent when H is not a multiple of 8, which
    is always a legal block size."""
    # TODO(synk): H % 8 != 0 could use a padded/cdiv grid with masking instead.
    if H % 8 != 0:
        return H
    cands = [t for t in range(8, H + 1, 8) if H % t == 0]
    fit = [t for t in cands if t * bytes_per_row <= budget] or [min(cands)]
    th = max(fit)
    while n_outer * (H // th) < min_steps:
        smaller = [t for t in fit if t < th]
        if not smaller:
            break
        th = max(smaller)
    return th


# ------------------------------ wrapper ---------------------------------------


@partial(jax.jit, static_argnames=("fuse_interleave",))
def _iwt_pallas(x, *, fuse_interleave=True):
    B, C, H, W = x.shape
    assert C % 4 == 0, "IWT needs in_channel divisible by 4"
    oc = C // 4

    # Metadata-only reshape: channel axis -> (wavelet group, out channel).
    x5 = x.reshape(B, 4, oc, H, W)

    isz = x.dtype.itemsize
    # Real per-H-row VMEM footprint: double-buffered input + f32 output blocks
    # plus the in-kernel f32 upcast / butterfly / lane-interleave temporaries.
    in_row = 4 * oc * W * isz
    out_row = oc * 4 * W * 4                      # f32 output (4W lanes/row)
    tmp_row = 3 * out_row                         # x_f32 + (a,b,c,d) + even/odd
    bytes_per_row = 2 * in_row + 2 * out_row + tmp_row

    cap, tile_budget = _vmem_caps()
    th = _pick_h_tile(H, bytes_per_row, tile_budget, B)
    vmem_limit = min(cap, max(tile_budget + (16 << 20),
                              th * bytes_per_row + (8 << 20)))

    grid = (B, H // th)
    in_spec = pl.BlockSpec((1, 4, oc, th, W), lambda b, h: (b, 0, 0, h, 0))
    params = pltpu.CompilerParams(
        dimension_semantics=("parallel", "parallel"),
        vmem_limit_bytes=int(vmem_limit))
    cost = pl.CostEstimate(
        flops=12 * B * oc * H * W,
        transcendentals=0,
        bytes_accessed=B * C * H * W * isz + B * oc * 4 * H * W * 4)

    if fuse_interleave:
        # Output stored lane-packed as (B, oc, H, 4W): both kernel stores are
        # sublane- and lane-dense; the final reshape is metadata-only.
        packed = pl.pallas_call(
            _iwt_fused_kernel,
            out_shape=jax.ShapeDtypeStruct((B, oc, H, 4 * W), jnp.float32),
            grid=grid,
            in_specs=[in_spec],
            out_specs=pl.BlockSpec((1, oc, th, 4 * W),
                                   lambda b, h: (b, 0, h, 0)),
            compiler_params=params,
            cost_estimate=cost,
        )(x5)
        return packed.reshape(B, oc, 2 * H, 2 * W)

    # Fallback path: 4 parity planes + XLA interleave (one extra HBM round trip).
    plane = jax.ShapeDtypeStruct((B, oc, H, W), jnp.float32)
    plane_spec = pl.BlockSpec((1, oc, th, W), lambda b, h: (b, 0, h, 0))
    a, b_, c, d = pl.pallas_call(
        _iwt_split_kernel,
        out_shape=(plane,) * 4,
        grid=grid,
        in_specs=[in_spec],
        out_specs=(plane_spec,) * 4,
        compiler_params=params,
        cost_estimate=cost,
    )(x5)
    even_rows = jnp.stack([a, c], axis=-1)          # (B, oc, H, W, 2)
    odd_rows = jnp.stack([b_, d], axis=-1)
    h = jnp.stack([even_rows, odd_rows], axis=-3)   # (B, oc, H, 2, W, 2)
    return h.reshape(B, oc, 2 * H, 2 * W)


_FUSED_OK = None   # cached capability-probe result (probe runs once)


def iwt(x):
    """Inverse wavelet transform: (B, 4*oc, H, W) -> (B, oc, 2H, 2W) float32."""
    global _FUSED_OK
    if _FUSED_OK is None:
        try:
            out = _iwt_pallas(x, fuse_interleave=True)
            jax.block_until_ready(out)   # one-time probe only, not on hot path
            _FUSED_OK = True
            return out
        except pltpu.LoweringException:
            _FUSED_OK = False            # Mosaic rejected the fused lowering
        except Exception:
            # Safety net (e.g. VMEM OOM on an exotic shape): fall back once,
            # decision is cached so this cost is never paid again.
            _FUSED_OK = False
    if _FUSED_OK:
        return _iwt_pallas(x, fuse_interleave=True)
    return _iwt_pallas(x, fuse_interleave=False)


# ------------------------------ reference -------------------------------------


def iwt_reference(x):
    """Pure-JAX reference mirroring the PyTorch iwt_init."""
    x = x.astype(jnp.float32)
    B, C, H, W = x.shape
    oc = C // 4
    x1 = x[:, 0:oc] / 2
    x2 = x[:, oc:2 * oc] / 2
    x3 = x[:, 2 * oc:3 * oc] / 2
    x4 = x[:, 3 * oc:4 * oc] / 2
    h = jnp.zeros((B, oc, 2 * H, 2 * W), jnp.float32)
    h = h.at[:, :, 0::2, 0::2].set(x1 - x2 - x3 + x4)
    h = h.at[:, :, 1::2, 0::2].set(x1 - x2 + x3 - x4)
    h = h.at[:, :, 0::2, 1::2].set(x1 + x2 - x3 - x4)
    h = h.at[:, :, 1::2, 1::2].set(x1 + x2 + x3 + x4)
    return h


if __name__ == "__main__":
    key = jax.random.PRNGKey(0)
    # in_channel must be divisible by 4 (r**2); B=2, C=4, H=W=16.
    x = jax.random.normal(key, (2, 4, 16, 16), dtype=jnp.float32)

    out = jax.block_until_ready(iwt(x))
    assert out.shape == (2, 1, 32, 32), out.shape
    assert out.dtype == jnp.float32
    ref = jax.block_until_ready(iwt_reference(x))
    assert jnp.allclose(out, ref, atol=1e-6, rtol=1e-6)

    # bf16 input: no wrapper astype -> half the input HBM traffic; the kernel
    # upcasts in VMEM (bf16->f32 is exact, so the comparison stays tight).
    xb = x.astype(jnp.bfloat16)
    out_b = jax.block_until_ready(iwt(xb))
    ref_b = jax.block_until_ready(iwt_reference(xb))
    assert out_b.dtype == jnp.float32
    assert jnp.allclose(out_b, ref_b, atol=1e-6, rtol=1e-6)

    print("KERNEL_OK")
</pallas_src>

<mosaic_0001>
module attributes {stable_mosaic.version = 11 : i64} {
  func.func @_iwt_fused_kernel(%arg0: i32, %arg1: i32, %arg2: memref<1x4x1x8x16xf32, #tpu.memory_space<vmem>>, %arg3: memref<1x1x8x64xf32, #tpu.memory_space<vmem>>) attributes {dimension_semantics = [#tpu.dimension_semantics<parallel>, #tpu.dimension_semantics<parallel>], iteration_bounds = array<i64: 2, 2>, scalar_prefetch = 0 : i64, scratch_operands = 0 : i64, tpu.core_type = #tpu.core_type<tc>, window_params = [{transform_indices = @transform_0, window_bounds = array<i64: 1, 4, 1, 8, 16>}, {transform_indices = @transform_1, window_bounds = array<i64: 1, 1, 8, 64>}]} {
    %c0 = arith.constant 0 : index
    %c0_0 = arith.constant 0 : index
    %c0_1 = arith.constant 0 : index
    %c0_2 = arith.constant 0 : index
    %c0_3 = arith.constant 0 : index
    %0 = vector.load %arg2[%c0, %c0_0, %c0_1, %c0_2, %c0_3] : memref<1x4x1x8x16xf32, #tpu.memory_space<vmem>>, vector<1x4x1x8x16xf32>
    %1 = vector.shape_cast %0 : vector<1x4x1x8x16xf32> to vector<4x1x8x16xf32>
    %cst = arith.constant 5.000000e-01 : f32
    %2 = vector.broadcast %cst : f32 to vector<4x1x8x16xf32>
    %3 = arith.mulf %1, %2 : vector<4x1x8x16xf32>
    %4 = vector.extract_strided_slice %3 {offsets = [0, 0, 0, 0], sizes = [1, 1, 8, 16], strides = [1, 1, 1, 1]} : vector<4x1x8x16xf32> to vector<1x1x8x16xf32>
    %5 = vector.shape_cast %4 : vector<1x1x8x16xf32> to vector<1x8x16xf32>
    %6 = vector.extract_strided_slice %3 {offsets = [1, 0, 0, 0], sizes = [1, 1, 8, 16], strides = [1, 1, 1, 1]} : vector<4x1x8x16xf32> to vector<1x1x8x16xf32>
    %7 = vector.shape_cast %6 : vector<1x1x8x16xf32> to vector<1x8x16xf32>
    %8 = vector.extract_strided_slice %3 {offsets = [2, 0, 0, 0], sizes = [1, 1, 8, 16], strides = [1, 1, 1, 1]} : vector<4x1x8x16xf32> to vector<1x1x8x16xf32>
    %9 = vector.shape_cast %8 : vector<1x1x8x16xf32> to vector<1x8x16xf32>
    %10 = vector.extract_strided_slice %3 {offsets = [3, 0, 0, 0], sizes = [1, 1, 8, 16], strides = [1, 1, 1, 1]} : vector<4x1x8x16xf32> to vector<1x1x8x16xf32>
    %11 = vector.shape_cast %10 : vector<1x1x8x16xf32> to vector<1x8x16xf32>
    %12 = arith.addf %5, %7 : vector<1x8x16xf32>
    %13 = arith.subf %5, %7 : vector<1x8x16xf32>
    %14 = arith.addf %9, %11 : vector<1x8x16xf32>
    %15 = arith.subf %9, %11 : vector<1x8x16xf32>
    %16 = arith.subf %13, %15 : vector<1x8x16xf32>
    %17 = arith.addf %13, %15 : vector<1x8x16xf32>
    %18 = arith.subf %12, %14 : vector<1x8x16xf32>
    %19 = arith.addf %12, %14 : vector<1x8x16xf32>
    %20 = vector.shape_cast %16 : vector<1x8x16xf32> to vector<1x8x16x1xf32>
    %21 = vector.shape_cast %18 : vector<1x8x16xf32> to vector<1x8x16x1xf32>
    %22 = tpu.concatenate %20, %21 in 3 : vector<1x8x16x1xf32>, vector<1x8x16x1xf32> -> vector<1x8x16x2xf32>
    %23 = vector.shape_cast %22 : vector<1x8x16x2xf32> to vector<1x8x32xf32>
    %24 = vector.shape_cast %17 : vector<1x8x16xf32> to vector<1x8x16x1xf32>
    %25 = vector.shape_cast %19 : vector<1x8x16xf32> to vector<1x8x16x1xf32>
    %26 = tpu.concatenate %24, %25 in 3 : vector<1x8x16x1xf32>, vector<1x8x16x1xf32> -> vector<1x8x16x2xf32>
    %27 = vector.shape_cast %26 : vector<1x8x16x2xf32> to vector<1x8x32xf32>
    %c0_4 = arith.constant 0 : index
    %c0_5 = arith.constant 0 : index
    %c0_6 = arith.constant 0 : index
    %c0_7 = arith.constant 0 : index
    %28 = vector.load %arg3[%c0_4, %c0_5, %c0_6, %c0_7] : memref<1x1x8x64xf32, #tpu.memory_space<vmem>>, vector<1x1x8x32xf32>
    %29 = vector.shape_cast %28 : vector<1x1x8x32xf32> to vector<1x8x32xf32>
    %30 = vector.shape_cast %23 : vector<1x8x32xf32> to vector<1x1x8x32xf32>
    tpu.vector_store %arg3[%c0_4, %c0_5, %c0_6, %c0_7], %30 {strides = array<i32>} : memref<1x1x8x64xf32, #tpu.memory_space<vmem>>, vector<1x1x8x32xf32>,
    %c0_8 = arith.constant 0 : index
    %c0_9 = arith.constant 0 : index
    %c0_10 = arith.constant 0 : index
    %c32 = arith.constant 32 : index
    %31 = vector.load %arg3[%c0_8, %c0_9, %c0_10, %c32] : memref<1x1x8x64xf32, #tpu.memory_space<vmem>>, vector<1x1x8x32xf32>
    %32 = vector.shape_cast %31 : vector<1x1x8x32xf32> to vector<1x8x32xf32>
    %33 = vector.shape_cast %27 : vector<1x8x32xf32> to vector<1x1x8x32xf32>
    tpu.vector_store %arg3[%c0_8, %c0_9, %c0_10, %c32], %33 {strides = array<i32>} : memref<1x1x8x64xf32, #tpu.memory_space<vmem>>, vector<1x1x8x32xf32>,
    return
  }
  func.func @transform_0(%arg0: i32, %arg1: i32) -> (i32, i32, i32, i32, i32) {
    %c0_i32 = arith.constant 0 : i32
    %c0_i32_0 = arith.constant 0 : i32
    %c0_i32_1 = arith.constant 0 : i32
    %c0_i32_2 = arith.constant 0 : i32
    return %arg0, %c0_i32, %c0_i32_0, %arg1, %c0_i32_1 : i32, i32, i32, i32, i32
  }
  func.func @transform_1(%arg0: i32, %arg1: i32) -> (i32, i32, i32, i32) {
    %c0_i32 = arith.constant 0 : i32
    %c0_i32_0 = arith.constant 0 : i32
    %c0_i32_1 = arith.constant 0 : i32
    return %arg0, %c0_i32, %arg1, %c0_i32_0 : i32, i32, i32, i32
  }
}

module attributes {stable_mosaic.version = 11 : i64} {
  func.func @_iwt_split_kernel(%arg0: i32, %arg1: i32, %arg2: memref<1x4x1x8x16xf32, #tpu.memory_space<vmem>>, %arg3: memref<1x1x8x16xf32, #tpu.memory_space<vmem>>, %arg4: memref<1x1x8x16xf32, #tpu.memory_space<vmem>>, %arg5: memref<1x1x8x16xf32, #tpu.memory_space<vmem>>, %arg6: memref<1x1x8x16xf32, #tpu.memory_space<vmem>>) attributes {dimension_semantics = [#tpu.dimension_semantics<parallel>, #tpu.dimension_semantics<parallel>], iteration_bounds = array<i64: 2, 2>, scalar_prefetch = 0 : i64, scratch_operands = 0 : i64, tpu.core_type = #tpu.core_type<tc>, window_params = [{transform_indices = @transform_0, window_bounds = array<i64: 1, 4, 1, 8, 16>}, {transform_indices = @transform_1, window_bounds = array<i64: 1, 1, 8, 16>}, {transform_indices = @transform_2, window_bounds = array<i64: 1, 1, 8, 16>}, {transform_indices = @transform_3, window_bounds = array<i64: 1, 1, 8, 16>}, {transform_indices = @transform_4, window_bounds = array<i64: 1, 1, 8, 16>}]} {
    %c0 = arith.constant 0 : index
    %c0_0 = arith.constant 0 : index
    %c0_1 = arith.constant 0 : index
    %c0_2 = arith.constant 0 : index
    %c0_3 = arith.constant 0 : index
    %0 = vector.load %arg2[%c0, %c0_0, %c0_1, %c0_2, %c0_3] : memref<1x4x1x8x16xf32, #tpu.memory_space<vmem>>, vector<1x4x1x8x16xf32>
    %1 = vector.shape_cast %0 : vector<1x4x1x8x16xf32> to vector<4x1x8x16xf32>
    %cst = arith.constant 5.000000e-01 : f32
    %2 = vector.broadcast %cst : f32 to vector<4x1x8x16xf32>
    %3 = arith.mulf %1, %2 : vector<4x1x8x16xf32>
    %4 = vector.extract_strided_slice %3 {offsets = [0, 0, 0, 0], sizes = [1, 1, 8, 16], strides = [1, 1, 1, 1]} : vector<4x1x8x16xf32> to vector<1x1x8x16xf32>
    %5 = vector.shape_cast %4 : vector<1x1x8x16xf32> to vector<1x8x16xf32>
    %6 = vector.extract_strided_slice %3 {offsets = [1, 0, 0, 0], sizes = [1, 1, 8, 16], strides = [1, 1, 1, 1]} : vector<4x1x8x16xf32> to vector<1x1x8x16xf32>
    %7 = vector.shape_cast %6 : vector<1x1x8x16xf32> to vector<1x8x16xf32>
    %8 = vector.extract_strided_slice %3 {offsets = [2, 0, 0, 0], sizes = [1, 1, 8, 16], strides = [1, 1, 1, 1]} : vector<4x1x8x16xf32> to vector<1x1x8x16xf32>
    %9 = vector.shape_cast %8 : vector<1x1x8x16xf32> to vector<1x8x16xf32>
    %10 = vector.extract_strided_slice %3 {offsets = [3, 0, 0, 0], sizes = [1, 1, 8, 16], strides = [1, 1, 1, 1]} : vector<4x1x8x16xf32> to vector<1x1x8x16xf32>
    %11 = vector.shape_cast %10 : vector<1x1x8x16xf32> to vector<1x8x16xf32>
    %12 = arith.addf %5, %7 : vector<1x8x16xf32>
    %13 = arith.subf %5, %7 : vector<1x8x16xf32>
    %14 = arith.addf %9, %11 : vector<1x8x16xf32>
    %15 = arith.subf %9, %11 : vector<1x8x16xf32>
    %16 = arith.subf %13, %15 : vector<1x8x16xf32>
    %17 = arith.addf %13, %15 : vector<1x8x16xf32>
    %18 = arith.subf %12, %14 : vector<1x8x16xf32>
    %19 = arith.addf %12, %14 : vector<1x8x16xf32>
    %c0_4 = arith.constant 0 : index
    %c0_5 = arith.constant 0 : index
    %c0_6 = arith.constant 0 : index
    %c0_7 = arith.constant 0 : index
    %20 = vector.load %arg3[%c0_4, %c0_5, %c0_6, %c0_7] : memref<1x1x8x16xf32, #tpu.memory_space<vmem>>, vector<1x1x8x16xf32>
    %21 = vector.shape_cast %20 : vector<1x1x8x16xf32> to vector<1x8x16xf32>
    %22 = vector.shape_cast %16 : vector<1x8x16xf32> to vector<1x1x8x16xf32>
    tpu.vector_store %arg3[%c0_4, %c0_5, %c0_6, %c0_7], %22 {strides = array<i32>} : memref<1x1x8x16xf32, #tpu.memory_space<vmem>>, vector<1x1x8x16xf32>,
    %c0_8 = arith.constant 0 : index
    %c0_9 = arith.constant 0 : index
    %c0_10 = arith.constant 0 : index
    %c0_11 = arith.constant 0 : index
    %23 = vector.load %arg4[%c0_8, %c0_9, %c0_10, %c0_11] : memref<1x1x8x16xf32, #tpu.memory_space<vmem>>, vector<1x1x8x16xf32>
    %24 = vector.shape_cast %23 : vector<1x1x8x16xf32> to vector<1x8x16xf32>
    %25 = vector.shape_cast %17 : vector<1x8x16xf32> to vector<1x1x8x16xf32>
    tpu.vector_store %arg4[%c0_8, %c0_9, %c0_10, %c0_11], %25 {strides = array<i32>} : memref<1x1x8x16xf32, #tpu.memory_space<vmem>>, vector<1x1x8x16xf32>,
    %c0_12 = arith.constant 0 : index
    %c0_13 = arith.constant 0 : index
    %c0_14 = arith.constant 0 : index
    %c0_15 = arith.constant 0 : index
    %26 = vector.load %arg5[%c0_12, %c0_13, %c0_14, %c0_15] : memref<1x1x8x16xf32, #tpu.memory_space<vmem>>, vector<1x1x8x16xf32>
    %27 = vector.shape_cast %26 : vector<1x1x8x16xf32> to vector<1x8x16xf32>
    %28 = vector.shape_cast %18 : vector<1x8x16xf32> to vector<1x1x8x16xf32>
    tpu.vector_store %arg5[%c0_12, %c0_13, %c0_14, %c0_15], %28 {strides = array<i32>} : memref<1x1x8x16xf32, #tpu.memory_space<vmem>>, vector<1x1x8x16xf32>,
    %c0_16 = arith.constant 0 : index
    %c0_17 = arith.constant 0 : index
    %c0_18 = arith.constant 0 : index
    %c0_19 = arith.constant 0 : index
    %29 = vector.load %arg6[%c0_16, %c0_17, %c0_18, %c0_19] : memref<1x1x8x16xf32, #tpu.memory_space<vmem>>, vector<1x1x8x16xf32>
    %30 = vector.shape_cast %29 : vector<1x1x8x16xf32> to vector<1x8x16xf32>
    %31 = vector.shape_cast %19 : vector<1x8x16xf32> to vector<1x1x8x16xf32>
    tpu.vector_store %arg6[%c0_16, %c0_17, %c0_18, %c0_19], %31 {strides = array<i32>} : memref<1x1x8x16xf32, #tpu.memory_space<vmem>>, vector<1x1x8x16xf32>,
    return
  }
  func.func @transform_0(%arg0: i32, %arg1: i32) -> (i32, i32, i32, i32, i32) {
    %c0_i32 = arith.constant 0 : i32
    %c0_i32_0 = arith.constant 0 : i32
    %c0_i32_1 = arith.constant 0 : i32
    %c0_i32_2 = arith.constant 0 : i32
    return %arg0, %c0_i32, %c0_i32_0, %arg1, %c0_i32_1 : i32, i32, i32, i32, i32
  }
  func.func @transform_1(%arg0: i32, %arg1: i32) -> (i32, i32, i32, i32) {
    %c0_i32 = arith.constant 0 : i32
    %c0_i32_0 = arith.constant 0 : i32
    %c0_i32_1 = arith.constant 0 : i32
    return %arg0, %c0_i32, %arg1, %c0_i32_0 : i32, i32, i32, i32
  }
  func.func @transform_2(%arg0: i32, %arg1: i32) -> (i32, i32, i32, i32) {
    %c0_i32 = arith.constant 0 : i32
    %c0_i32_0 = arith.constant 0 : i32
    %c0_i32_1 = arith.constant 0 : i32
    return %arg0, %c0_i32, %arg1, %c0_i32_0 : i32, i32, i32, i32
  }
  func.func @transform_3(%arg0: i32, %arg1: i32) -> (i32, i32, i32, i32) {
    %c0_i32 = arith.constant 0 : i32
    %c0_i32_0 = arith.constant 0 : i32
    %c0_i32_1 = arith.constant 0 : i32
    return %arg0, %c0_i32, %arg1, %c0_i32_0 : i32, i32, i32, i32
  }
  func.func @transform_4(%arg0: i32, %arg1: i32) -> (i32, i32, i32, i32) {
    %c0_i32 = arith.constant 0 : i32
    %c0_i32_0 = arith.constant 0 : i32
    %c0_i32_1 = arith.constant 0 : i32
    return %arg0, %c0_i32, %arg1, %c0_i32_0 : i32, i32, i32, i32
  }
}

</mosaic_0001>

<llo_original>
// kernel: _iwt_pallas.1
$region0: #{_iwt_pallas.1}
  #allocation0 [shape = 'u32[]', space=smem, size = 0x4, offset = 0x4, fixed_abs, tag = 'smem constant byte address 0x4 - core index']
  #allocation1 [shape = 'u32[144,128]{1,0:T(1,128)}', space=vmem, size = 0x12000, scoped, tag = 'internal scratch']
  %s0 = inlined_call_operand.hbm [shape: f32[2,4,1,16,16], index: 0, kind: input, shape index: {}]
  %s1 = inlined_call_operand.vmem [shape: f32[2,1,16,64], index: 1, kind: output, shape index: {}]
  %s2 = sld [smem:[#allocation0]]
  $region41: #{_iwt_pallas.1} parent=0
    _
  %s4 = ssub.s32 1, %s2
  %s5 = scalar_select 0, %s4, %s2
  $region1: #{_iwt_pallas.1} parent=0
    #allocation2 [shape = 'u8[32768]{0}', space=vmem, size = 0x8000, scoped, tag = 'input window, operand 0']
    #allocation3 [shape = 's32[2]{0}', space=sflag, size = 0x8, scoped, tag = 'scoped memory for _iwt_pallas.1']
    %6 = vsyncpa [#allocation3], 0
    %s7 = scalar_lea.sflag [#allocation3], 1
    %8 = vsyncpa %s7, 0
    loop: start=0, step=1, limit=6
    $region2: #{_iwt_pallas.1} parent=1 // loop_pre_header
      _
    $region3: #{_iwt_pallas.1} parent=1 // loop_header
      %s10 = sphi 0, %s14
      %p11 = scmp.ge.s32.totalorder %s10, 6
      %s17 = sphi 0, %s29
      %s18 = sphi 0, %s25
      %s19 = sphi 0, %s17
      %s20 = sphi 0, %s18
      %s21 = sphi 0, %s19
      %s22 = sphi 0, %s20
      %s34 = sphi 0, %s36
      %s37 = sphi 0, %s34
      %s38 = sphi 0, %s37
      %s54 = sphi 0, %s38
      %s62 = sphi 0, %s64
      %s65 = sphi 0, %s62
      %s66 = sphi 0, %s65
      %s82 = sphi 0, %s66
    $region4: #{_iwt_pallas.1} parent=1 // loop_header_branch
      %13 = sbr.rel (%p11) target = $region8
    $region5: #{_iwt_pallas.1} parent=1 // loop_body
      %s15 = ssub.s32 %s10, 1
      %s16 = ssub.s32 %s10, 2
      %s23 = sadd.s32 1, %s18
      %p24 = scmp.ge.s32.totalorder %s23, 2
      %s25 = scalar_select %p24, 0, %s23
      %s26 = sadd.s32 1, %s17
      %s27 = scalar_select %p24, %s26, %s17
      %p28 = scmp.ge.s32.totalorder %s27, 2
      %s29 = scalar_select %p28, 0, %s27
      %s30 = ssub.s32 %s17, %s29
      %s31 = ssub.s32 %s18, %s25
      %s32 = sor.u32 %s30, %s31
      %p33 = scmp.eq.s32.totalorder %s32, 0
      %s35 = sadd.s32 %s34, 1
      %s36 = scalar_select %p33, %s34, %s35
      %p39 = pneg %p33
      %p40 = scmp.eq.s32.totalorder %s10, 3
      %p41 = por %p39, %p40
      %p42 = scmp.ne.s32.totalorder %s34, %s37
      %p43 = scmp.eq.s32.totalorder %s10, 0
      %p44 = por %p42, %p43
      %p45 = scmp.ne.s32.totalorder %s34, %s37
      %p46 = scmp.eq.s32.totalorder %s15, 3
      %p47 = por %p45, %p46
      %p48 = scmp.ne.s32.totalorder %s37, %s38
      %p49 = scmp.eq.s32.totalorder %s15, 0
      %p50 = por %p48, %p49
      %p51 = scmp.ne.s32.totalorder %s37, %s38
      %p52 = scmp.eq.s32.totalorder %s16, 3
      %p53 = por %p51, %p52
      %p55 = scmp.ne.s32.totalorder %s38, %s54
      %p56 = scmp.eq.s32.totalorder %s16, 0
      %p57 = por %p55, %p56
      %s58 = ssub.s32 %s17, %s29
      %s59 = ssub.s32 %s18, %s25
      %s60 = sor.u32 %s58, %s59
      %p61 = scmp.eq.s32.totalorder %s60, 0
      %s63 = sadd.s32 %s62, 1
      %s64 = scalar_select %p61, %s62, %s63
      %p67 = pneg %p61
      %p68 = scmp.eq.s32.totalorder %s10, 3
      %p69 = por %p67, %p68
      %p70 = scmp.ne.s32.totalorder %s62, %s65
      %p71 = scmp.eq.s32.totalorder %s10, 0
      %p72 = por %p70, %p71
      %p73 = scmp.ne.s32.totalorder %s62, %s65
      %p74 = scmp.eq.s32.totalorder %s15, 3
      %p75 = por %p73, %p74
      %p76 = scmp.ne.s32.totalorder %s65, %s66
      %p77 = scmp.eq.s32.totalorder %s15, 0
      %p78 = por %p76, %p77
      %p79 = scmp.ne.s32.totalorder %s65, %s66
      %p80 = scmp.eq.s32.totalorder %s16, 3
      %p81 = por %p79, %p80
      %p83 = scmp.ne.s32.totalorder %s66, %s82
      %p84 = scmp.eq.s32.totalorder %s16, 0
      %p85 = por %p83, %p84
      %p86 = scmp.le.s32.totalorder 1, %s10
      %p87 = scmp.lt.s32.totalorder %s10, 5
      %p88 = pnand %p86, %p87
      %p89 = pneg %p88
      // Predicated region
      $region9: #{_iwt_pallas.1} parent=5 // pred_check
        _
      $region10: #{_iwt_pallas.1} parent=5 // pred_check_branch
        %91 = sbr.rel (%p88) target = $region12
      $region11: #{_iwt_pallas.1} parent=5 // pred_region
        %s92 = ssub.s32 %s10, 1
      $region12: #{_iwt_pallas.1} parent=5 // pred_fallthru
        _
      %p93 = scmp.lt.s32.totalorder %s10, 4
      // Predicated region
      $region13: #{_iwt_pallas.1} parent=5 // pred_check
        %p94 = pneg %p93
      $region14: #{_iwt_pallas.1} parent=5 // pred_check_branch
        %96 = sbr.rel (%p94) target = $region16
      $region15: #{_iwt_pallas.1} parent=5 // pred_region
        // Predicated region
        $region17: #{_iwt_pallas.1} parent=15 // pred_check
          %p97 = pneg %p44
        $region18: #{_iwt_pallas.1} parent=15 // pred_check_branch
          %99 = sbr.rel (%p97) target = $region20
        $region19: #{_iwt_pallas.1} parent=15 // pred_region
          %s100 = sand.u32 %s34, 1
          %s101 = scalar_lea.sflag [#allocation3], %s100
          %s102 = sand.u32 %s34, 1
          %s103 = smul.addr %s102, 32
          %s104 = scalar_lea.vmem [#allocation2], %s103
          %s106 = ssub.s32 512, 512
          %107 = vsyncadd %s101, %s106
          %s108 = smul.addr %s17, 8
          %s109 = sadd.s32 %s18, %s108
          %s110 = smul.addr %s109, 128
          %s111 = scalar_lea.hbm %s0, %s110
          %s112 = sshll.u32 %s104, 4
          %s113 = int_to_ptr.vmem [resolvable:$true] %s112
          %118 = dma.hbm_to_vmem [thread:$0]  %s111, 512, %s113, %s101, 256, 128, 8
        $region20: #{_iwt_pallas.1} parent=15 // pred_fallthru
          _
      $region16: #{_iwt_pallas.1} parent=5 // pred_fallthru
        _
      %p119 = scmp.le.s32.totalorder 1, %s10
      %p120 = scmp.lt.s32.totalorder %s10, 5
      %p121 = pnand %p119, %p120
      %p122 = pneg %p121
      // Predicated region
      $region21: #{_iwt_pallas.1} parent=5 // pred_check
        _
      $region22: #{_iwt_pallas.1} parent=5 // pred_check_branch
        %124 = sbr.rel (%p121) target = $region24
      $region23: #{_iwt_pallas.1} parent=5 // pred_region
        %s125 = ssub.s32 %s10, 1
        %s126 = sand.u32 %s37, 1
        %s127 = scalar_lea.sflag [#allocation3], %s126
        %s128 = sand.u32 %s37, 1
        %s129 = smul.addr %s128, 32
        %s130 = scalar_lea.vmem [#allocation2], %s129
        // Predicated region
        $region25: #{_iwt_pallas.1} parent=23 // pred_check
          %p131 = pneg %p50
        $region26: #{_iwt_pallas.1} parent=23 // pred_check_branch
          %133 = sbr.rel (%p131) target = $region28
        $region27: #{_iwt_pallas.1} parent=23 // pred_region
          %134 = dma.done %s127, 512
        $region28: #{_iwt_pallas.1} parent=23 // pred_fallthru
          _
        %s135 = sand.u32 %s37, 1
        %s136 = scalar_lea.sflag [#allocation3], %s135
        %s137 = sand.u32 %s37, 1
        %s138 = smul.addr %s137, 32
        %s139 = scalar_lea.vmem [#allocation2], %s138
        %p140 = pneg %p50
        %p141 = pneg %p47
        %p142 = pneg %p78
        %p143 = pneg %p75
        %p144 = scmp.lt.s32.totalorder %s19, 1
        %s145 = scalar_select %p144, %s19, 1
        %p146 = scmp.lt.s32.totalorder %s20, 1
        %s147 = scalar_select %p146, %s20, 1
        %s148 = smul.addr %s145, 2
        %s149 = sadd.s32 %s147, %s148
        %s150 = smul.addr %s149, 8
        %s151 = scalar_lea.vmem %s1, %s150
        %p152 = scmp.lt.s32.totalorder %s19, 1
        %s153 = scalar_select %p152, %s19, 1
        %p154 = scmp.lt.s32.totalorder %s20, 1
        %s155 = scalar_select %p154, %s20, 1
        %s156 = smul.addr %s153, 2
        %s157 = sadd.s32 %s155, %s156
        %s158 = smul.addr %s157, 8
        %s159 = scalar_lea.vmem %s1, %s158
        %v160 = vld [vmem:[%s130] sm:$0xff]
        %v161 = vld [vmem:[%s130 + $0x8] sm:$0xff]
        %v162 = vld [vmem:[%s130 + $0x10] sm:$0xff]
        %v163 = vld [vmem:[%s130 + $0x18] sm:$0xff]
        %v164 = vmul.f32 %v160, 0.5
        %v165 = vmul.f32 %v161, 0.5
        %v166 = vmul.f32 %v162, 0.5
        %v167 = vmul.f32 %v163, 0.5
        %v168 = vadd.f32 %v164, %v165
        %v169 = vsub.f32 %v164, %v165
        %v170 = vadd.f32 %v166, %v167
        %v171 = vsub.f32 %v166, %v167
        %v172 = vsub.f32 %v169, %v171
        %v173 = vadd.f32 %v169, %v171
        %v174 = vsub.f32 %v168, %v170
        %v175 = vadd.f32 %v168, %v170
        %v176 = vlaneseq
        %v177 = vshrl.u32 %v176, 7
        %v178 = vsub.s32 0, %v177
        %v179 = vrot.slane %v172, %v178
        %181 = vbcast.lane.b32.xlu0 %v179, 256
        %v182 = vpop.permute.xlu0 %181
        %s184 = sor.u32 256, 8
        %185 = vbcast.lane.b32.xlu0 %v179, %s184
        %v186 = vpop.permute.xlu0 %185
        %v187 = vlaneseq
        %v188 = vshrl.u32 %v187, 7
        %v189 = vsub.s32 1, %v188
        %v190 = vrot.slane %v172, %v189
        %192 = vbcast.lane.b32.xlu0 %v190, 256
        %v193 = vpop.permute.xlu0 %192
        %s195 = sor.u32 256, 8
        %196 = vbcast.lane.b32.xlu0 %v190, %s195
        %v197 = vpop.permute.xlu0 %196
        %v198 = vlaneseq
        %v199 = vshrl.u32 %v198, 7
        %v200 = vsub.s32 2, %v199
        %v201 = vrot.slane %v172, %v200
        %203 = vbcast.lane.b32.xlu0 %v201, 256
        %v204 = vpop.permute.xlu0 %203
        %s206 = sor.u32 256, 8
        %207 = vbcast.lane.b32.xlu0 %v201, %s206
        %v208 = vpop.permute.xlu0 %207
        %v209 = vlaneseq
        %v210 = vshrl.u32 %v209, 7
        %v211 = vsub.s32 3, %v210
        %v212 = vrot.slane %v172, %v211
        %214 = vbcast.lane.b32.xlu0 %v212, 256
        %v215 = vpop.permute.xlu0 %214
        %s217 = sor.u32 256, 8
        %218 = vbcast.lane.b32.xlu0 %v212, %s217
        %v219 = vpop.permute.xlu0 %218
        %v220 = vlaneseq
        %v221 = vshrl.u32 %v220, 7
        %v222 = vsub.s32 4, %v221
        %v223 = vrot.slane %v172, %v222
        %225 = vbcast.lane.b32.xlu0 %v223, 256
        %v226 = vpop.permute.xlu0 %225
        %s228 = sor.u32 256, 8
        %229 = vbcast.lane.b32.xlu0 %v223, %s228
        %v230 = vpop.permute.xlu0 %229
        %v231 = vlaneseq
        %v232 = vshrl.u32 %v231, 7
        %v233 = vsub.s32 5, %v232
        %v234 = vrot.slane %v172, %v233
        %236 = vbcast.lane.b32.xlu0 %v234, 256
        %v237 = vpop.permute.xlu0 %236
        %s239 = sor.u32 256, 8
        %240 = vbcast.lane.b32.xlu0 %v234, %s239
        %v241 = vpop.permute.xlu0 %240
        %v242 = vlaneseq
        %v243 = vshrl.u32 %v242, 7
        %v244 = vsub.s32 6, %v243
        %v245 = vrot.slane %v172, %v244
        %247 = vbcast.lane.b32.xlu0 %v245, 256
        %v248 = vpop.permute.xlu0 %247
        %s250 = sor.u32 256, 8
        %251 = vbcast.lane.b32.xlu0 %v245, %s250
        %v252 = vpop.permute.xlu0 %251
        %v253 = vlaneseq
        %v254 = vshrl.u32 %v253, 7
        %v255 = vsub.s32 7, %v254
        %v256 = vrot.slane %v172, %v255
        %258 = vbcast.lane.b32.xlu0 %v256, 256
        %v259 = vpop.permute.xlu0 %258
        %s261 = sor.u32 256, 8
        %262 = vbcast.lane.b32.xlu0 %v256, %s261
        %v263 = vpop.permute.xlu0 %262
        %v264 = vlaneseq
        %v265 = vshrl.u32 %v264, 7
        %v266 = vsub.s32 0, %v265
        %v267 = vrot.slane %v174, %v266
        %269 = vbcast.lane.b32.xlu0 %v267, 256
        %v270 = vpop.permute.xlu0 %269
        %s272 = sor.u32 256, 8
        %273 = vbcast.lane.b32.xlu0 %v267, %s272
        %v274 = vpop.permute.xlu0 %273
        %v275 = vlaneseq
        %v276 = vshrl.u32 %v275, 7
        %v277 = vsub.s32 1, %v276
        %v278 = vrot.slane %v174, %v277
        %280 = vbcast.lane.b32.xlu0 %v278, 256
        %v281 = vpop.permute.xlu0 %280
        %s283 = sor.u32 256, 8
        %284 = vbcast.lane.b32.xlu0 %v278, %s283
        %v285 = vpop.permute.xlu0 %284
        %v286 = vlaneseq
        %v287 = vshrl.u32 %v286, 7
        %v288 = vsub.s32 2, %v287
        %v289 = vrot.slane %v174, %v288
        %291 = vbcast.lane.b32.xlu0 %v289, 256
        %v292 = vpop.permute.xlu0 %291
        %s294 = sor.u32 256, 8
        %295 = vbcast.lane.b32.xlu0 %v289, %s294
        %v296 = vpop.permute.xlu0 %295
        %v297 = vlaneseq
        %v298 = vshrl.u32 %v297, 7
        %v299 = vsub.s32 3, %v298
        %v300 = vrot.slane %v174, %v299
        %302 = vbcast.lane.b32.xlu0 %v300, 256
        %v303 = vpop.permute.xlu0 %302
        %s305 = sor.u32 256, 8
        %306 = vbcast.lane.b32.xlu0 %v300, %s305
        %v307 = vpop.permute.xlu0 %306
        %v308 = vlaneseq
        %v309 = vshrl.u32 %v308, 7
        %v310 = vsub.s32 4, %v309
        %v311 = vrot.slane %v174, %v310
        %313 = vbcast.lane.b32.xlu0 %v311, 256
        %v314 = vpop.permute.xlu0 %313
        %s316 = sor.u32 256, 8
        %317 = vbcast.lane.b32.xlu0 %v311, %s316
        %v318 = vpop.permute.xlu0 %317
        %v319 = vlaneseq
        %v320 = vshrl.u32 %v319, 7
        %v321 = vsub.s32 5, %v320
        %v322 = vrot.slane %v174, %v321
        %324 = vbcast.lane.b32.xlu0 %v322, 256
        %v325 = vpop.permute.xlu0 %324
        %s327 = sor.u32 256, 8
        %328 = vbcast.lane.b32.xlu0 %v322, %s327
        %v329 = vpop.permute.xlu0 %328
        %v330 = vlaneseq
        %v331 = vshrl.u32 %v330, 7
        %v332 = vsub.s32 6, %v331
        %v333 = vrot.slane %v174, %v332
        %335 = vbcast.lane.b32.xlu0 %v333, 256
        %v336 = vpop.permute.xlu0 %335
        %s338 = sor.u32 256, 8
        %339 = vbcast.lane.b32.xlu0 %v333, %s338
        %v340 = vpop.permute.xlu0 %339
        %v341 = vlaneseq
        %v342 = vshrl.u32 %v341, 7
        %v343 = vsub.s32 7, %v342
        %v344 = vrot.slane %v174, %v343
        %346 = vbcast.lane.b32.xlu0 %v344, 256
        %v347 = vpop.permute.xlu0 %346
        %s349 = sor.u32 256, 8
        %350 = vbcast.lane.b32.xlu0 %v344, %s349
        %v351 = vpop.permute.xlu0 %350
        %vm352 = vcmask 7168
        %v353 = vsel %vm352, %v182, %v270
        %v354 = vsel %vm352, %v186, %v274
        %v355 = vsel %vm352, %v193, %v281
        %v356 = vsel %vm352, %v197, %v285
        %v357 = vsel %vm352, %v204, %v292
        %v358 = vsel %vm352, %v208, %v296
        %v359 = vsel %vm352, %v215, %v303
        %v360 = vsel %vm352, %v219, %v307
        %v361 = vsel %vm352, %v226, %v314
        %v362 = vsel %vm352, %v230, %v318
        %v363 = vsel %vm352, %v237, %v325
        %v364 = vsel %vm352, %v241, %v329
        %v365 = vsel %vm352, %v248, %v336
        %v366 = vsel %vm352, %v252, %v340
        %v367 = vsel %vm352, %v259, %v347
        %v368 = vsel %vm352, %v263, %v351
        %v369 = vlaneseq
        %v370 = vshrl.u32 %v369, 7
        %v371 = vsub.s32 0, %v370
        %v372 = vrot.slane %v173, %v371
        %374 = vbcast.lane.b32.xlu0 %v372, 256
        %v375 = vpop.permute.xlu0 %374
        %s377 = sor.u32 256, 8
        %378 = vbcast.lane.b32.xlu0 %v372, %s377
        %v379 = vpop.permute.xlu0 %378
        %v380 = vlaneseq
        %v381 = vshrl.u32 %v380, 7
        %v382 = vsub.s32 1, %v381
        %v383 = vrot.slane %v173, %v382
        %385 = vbcast.lane.b32.xlu0 %v383, 256
        %v386 = vpop.permute.xlu0 %385
        %s388 = sor.u32 256, 8
        %389 = vbcast.lane.b32.xlu0 %v383, %s388
        %v390 = vpop.permute.xlu0 %389
        %v391 = vlaneseq
        %v392 = vshrl.u32 %v391, 7
        %v393 = vsub.s32 2, %v392
        %v394 = vrot.slane %v173, %v393
        %396 = vbcast.lane.b32.xlu0 %v394, 256
        %v397 = vpop.permute.xlu0 %396
        %s399 = sor.u32 256, 8
        %400 = vbcast.lane.b32.xlu0 %v394, %s399
        %v401 = vpop.permute.xlu0 %400
        %v402 = vlaneseq
        %v403 = vshrl.u32 %v402, 7
        %v404 = vsub.s32 3, %v403
        %v405 = vrot.slane %v173, %v404
        %407 = vbcast.lane.b32.xlu0 %v405, 256
        %v408 = vpop.permute.xlu0 %407
        %s410 = sor.u32 256, 8
        %411 = vbcast.lane.b32.xlu0 %v405, %s410
        %v412 = vpop.permute.xlu0 %411
        %v413 = vlaneseq
        %v414 = vshrl.u32 %v413, 7
        %v415 = vsub.s32 4, %v414
        %v416 = vrot.slane %v173, %v415
        %418 = vbcast.lane.b32.xlu0 %v416, 256
        %v419 = vpop.permute.xlu0 %418
        %s421 = sor.u32 256, 8
        %422 = vbcast.lane.b32.xlu0 %v416, %s421
        %v423 = vpop.permute.xlu0 %422
        %v424 = vlaneseq
        %v425 = vshrl.u32 %v424, 7
        %v426 = vsub.s32 5, %v425
        %v427 = vrot.slane %v173, %v426
        %429 = vbcast.lane.b32.xlu0 %v427, 256
        %v430 = vpop.permute.xlu0 %429
        %s432 = sor.u32 256, 8
        %433 = vbcast.lane.b32.xlu0 %v427, %s432
        %v434 = vpop.permute.xlu0 %433
        %v435 = vlaneseq
        %v436 = vshrl.u32 %v435, 7
        %v437 = vsub.s32 6, %v436
        %v438 = vrot.slane %v173, %v437
        %440 = vbcast.lane.b32.xlu0 %v438, 256
        %v441 = vpop.permute.xlu0 %440
        %s443 = sor.u32 256, 8
        %444 = vbcast.lane.b32.xlu0 %v438, %s443
        %v445 = vpop.permute.xlu0 %444
        %v446 = vlaneseq
        %v447 = vshrl.u32 %v446, 7
        %v448 = vsub.s32 7, %v447
        %v449 = vrot.slane %v173, %v448
        %451 = vbcast.lane.b32.xlu0 %v449, 256
        %v452 = vpop.permute.xlu0 %451
        %s454 = sor.u32 256, 8
        %455 = vbcast.lane.b32.xlu0 %v449, %s454
        %v456 = vpop.permute.xlu0 %455
        %v457 = vlaneseq
        %v458 = vshrl.u32 %v457, 7
        %v459 = vsub.s32 0, %v458
        %v460 = vrot.slane %v175, %v459
        %462 = vbcast.lane.b32.xlu0 %v460, 256
        %v463 = vpop.permute.xlu0 %462
        %s465 = sor.u32 256, 8
        %466 = vbcast.lane.b32.xlu0 %v460, %s465
        %v467 = vpop.permute.xlu0 %466
        %v468 = vlaneseq
        %v469 = vshrl.u32 %v468, 7
        %v470 = vsub.s32 1, %v469
        %v471 = vrot.slane %v175, %v470
        %473 = vbcast.lane.b32.xlu0 %v471, 256
        %v474 = vpop.permute.xlu0 %473
        %s476 = sor.u32 256, 8
        %477 = vbcast.lane.b32.xlu0 %v471, %s476
        %v478 = vpop.permute.xlu0 %477
        %v479 = vlaneseq
        %v480 = vshrl.u32 %v479, 7
        %v481 = vsub.s32 2, %v480
        %v482 = vrot.slane %v175, %v481
        %484 = vbcast.lane.b32.xlu0 %v482, 256
        %v485 = vpop.permute.xlu0 %484
        %s487 = sor.u32 256, 8
        %488 = vbcast.lane.b32.xlu0 %v482, %s487
        %v489 = vpop.permute.xlu0 %488
        %v490 = vlaneseq
        %v491 = vshrl.u32 %v490, 7
        %v492 = vsub.s32 3, %v491
        %v493 = vrot.slane %v175, %v492
        %495 = vbcast.lane.b32.xlu0 %v493, 256
        %v496 = vpop.permute.xlu0 %495
        %s498 = sor.u32 256, 8
        %499 = vbcast.lane.b32.xlu0 %v493, %s498
        %v500 = vpop.permute.xlu0 %499
        %v501 = vlaneseq
        %v502 = vshrl.u32 %v501, 7
        %v503 = vsub.s32 4, %v502
        %v504 = vrot.slane %v175, %v503
        %506 = vbcast.lane.b32.xlu0 %v504, 256
        %v507 = vpop.permute.xlu0 %506
        %s509 = sor.u32 256, 8
        %510 = vbcast.lane.b32.xlu0 %v504, %s509
        %v511 = vpop.permute.xlu0 %510
        %v512 = vlaneseq
        %v513 = vshrl.u32 %v512, 7
        %v514 = vsub.s32 5, %v513
        %v515 = vrot.slane %v175, %v514
        %517 = vbcast.lane.b32.xlu0 %v515, 256
        %v518 = vpop.permute.xlu0 %517
        %s520 = sor.u32 256, 8
        %521 = vbcast.lane.b32.xlu0 %v515, %s520
        %v522 = vpop.permute.xlu0 %521
        %v523 = vlaneseq
        %v524 = vshrl.u32 %v523, 7
        %v525 = vsub.s32 6, %v524
        %v526 = vrot.slane %v175, %v525
        %528 = vbcast.lane.b32.xlu0 %v526, 256
        %v529 = vpop.permute.xlu0 %528
        %s531 = sor.u32 256, 8
        %532 = vbcast.lane.b32.xlu0 %v526, %s531
        %v533 = vpop.permute.xlu0 %532
        %v534 = vlaneseq
        %v535 = vshrl.u32 %v534, 7
        %v536 = vsub.s32 7, %v535
        %v537 = vrot.slane %v175, %v536
        %539 = vbcast.lane.b32.xlu0 %v537, 256
        %v540 = vpop.permute.xlu0 %539
        %s542 = sor.u32 256, 8
        %543 = vbcast.lane.b32.xlu0 %v537, %s542
        %v544 = vpop.permute.xlu0 %543
        %v545 = vsel %vm352, %v375, %v463
        %v546 = vsel %vm352, %v379, %v467
        %v547 = vsel %vm352, %v386, %v474
        %v548 = vsel %vm352, %v390, %v478
        %v549 = vsel %vm352, %v397, %v485
        %v550 = vsel %vm352, %v401, %v489
        %v551 = vsel %vm352, %v408, %v496
        %v552 = vsel %vm352, %v412, %v500
        %v553 = vsel %vm352, %v419, %v507
        %v554 = vsel %vm352, %v423, %v511
        %v555 = vsel %vm352, %v430, %v518
        %v556 = vsel %vm352, %v434, %v522
        %v557 = vsel %vm352, %v441, %v529
        %v558 = vsel %vm352, %v445, %v533
        %v559 = vsel %vm352, %v452, %v540
        %v560 = vsel %vm352, %v456, %v544
        %v561 = vcombine.low %v353, %v357
        %v562 = vcombine.high %v353, %v357
        %v564 = vunpack.c.l.s4 1983009808
        %v565 = vunpack.c.0.s8 %v564
        %v566 = vlaneseq
        %v567 = vshrl.u32 %v566, 7
        %v568 = vsub.s32 %v565, %v567
        %v569 = vrot.slane %v561, %v568
        %v571 = vunpack.c.l.s4 1983009808
        %v572 = vunpack.c.0.s8 %v571
        %v573 = vlaneseq
        %v574 = vshrl.u32 %v573, 7
        %v575 = vsub.s32 %v572, %v574
        %v576 = vrot.slane %v562, %v575
        %v577 = vcombine.low %v355, %v359
        %v578 = vcombine.high %v355, %v359
        %v580 = vunpack.c.l.s4 1983009808
        %v581 = vunpack.c.0.s8 %v580
        %v582 = vlaneseq
        %v583 = vshrl.u32 %v582, 7
        %v584 = vsub.s32 %v581, %v583
        %v585 = vrot.slane %v577, %v584
        %v587 = vunpack.c.l.s4 1983009808
        %v588 = vunpack.c.0.s8 %v587
        %v589 = vlaneseq
        %v590 = vshrl.u32 %v589, 7
        %v591 = vsub.s32 %v588, %v590
        %v592 = vrot.slane %v578, %v591
        %v593 = vcombine.low %v361, %v365
        %v594 = vcombine.high %v361, %v365
        %v596 = vunpack.c.l.s4 1983009808
        %v597 = vunpack.c.0.s8 %v596
        %v598 = vlaneseq
        %v599 = vshrl.u32 %v598, 7
        %v600 = vsub.s32 %v597, %v599
        %v601 = vrot.slane %v593, %v600
        %v603 = vunpack.c.l.s4 1983009808
        %v604 = vunpack.c.0.s8 %v603
        %v605 = vlaneseq
        %v606 = vshrl.u32 %v605, 7
        %v607 = vsub.s32 %v604, %v606
        %v608 = vrot.slane %v594, %v607
        %v609 = vcombine.low %v363, %v367
        %v610 = vcombine.high %v363, %v367
        %v612 = vunpack.c.l.s4 1983009808
        %v613 = vunpack.c.0.s8 %v612
        %v614 = vlaneseq
        %v615 = vshrl.u32 %v614, 7
        %v616 = vsub.s32 %v613, %v615
        %v617 = vrot.slane %v609, %v616
        %v619 = vunpack.c.l.s4 1983009808
        %v620 = vunpack.c.0.s8 %v619
        %v621 = vlaneseq
        %v622 = vshrl.u32 %v621, 7
        %v623 = vsub.s32 %v620, %v622
        %v624 = vrot.slane %v610, %v623
        %v625 = vcombine.low %v569, %v585
        %v626 = vcombine.high %v569, %v585
        %v628 = vunpack.c.l.s4 1934713408
        %v629 = vunpack.c.0.s8 %v628
        %v630 = vlaneseq
        %v631 = vshrl.u32 %v630, 7
        %v632 = vsub.s32 %v629, %v631
        %v633 = vrot.slane %v625, %v632
        %v635 = vunpack.c.l.s4 1934713408
        %v636 = vunpack.c.0.s8 %v635
        %v637 = vlaneseq
        %v638 = vshrl.u32 %v637, 7
        %v639 = vsub.s32 %v636, %v638
        %v640 = vrot.slane %v626, %v639
        %v641 = vcombine.low %v576, %v592
        %v642 = vcombine.high %v576, %v592
        %v644 = vunpack.c.l.s4 1934713408
        %v645 = vunpack.c.0.s8 %v644
        %v646 = vlaneseq
        %v647 = vshrl.u32 %v646, 7
        %v648 = vsub.s32 %v645, %v647
        %v649 = vrot.slane %v641, %v648
        %v651 = vunpack.c.l.s4 1934713408
        %v652 = vunpack.c.0.s8 %v651
        %v653 = vlaneseq
        %v654 = vshrl.u32 %v653, 7
        %v655 = vsub.s32 %v652, %v654
        %v656 = vrot.slane %v642, %v655
        %v657 = vcombine.low %v601, %v617
        %v658 = vcombine.high %v601, %v617
        %v660 = vunpack.c.l.s4 1934713408
        %v661 = vunpack.c.0.s8 %v660
        %v662 = vlaneseq
        %v663 = vshrl.u32 %v662, 7
        %v664 = vsub.s32 %v661, %v663
        %v665 = vrot.slane %v657, %v664
        %v667 = vunpack.c.l.s4 1934713408
        %v668 = vunpack.c.0.s8 %v667
        %v669 = vlaneseq
        %v670 = vshrl.u32 %v669, 7
        %v671 = vsub.s32 %v668, %v670
        %v672 = vrot.slane %v658, %v671
        %v673 = vcombine.low %v608, %v624
        %v674 = vcombine.high %v608, %v624
        %v676 = vunpack.c.l.s4 1934713408
        %v677 = vunpack.c.0.s8 %v676
        %v678 = vlaneseq
        %v679 = vshrl.u32 %v678, 7
        %v680 = vsub.s32 %v677, %v679
        %v681 = vrot.slane %v673, %v680
        %v683 = vunpack.c.l.s4 1934713408
        %v684 = vunpack.c.0.s8 %v683
        %v685 = vlaneseq
        %v686 = vshrl.u32 %v685, 7
        %v687 = vsub.s32 %v684, %v686
        %v688 = vrot.slane %v674, %v687
        %v689 = vcombine.low %v633, %v665
        %v690 = vcombine.high %v633, %v665
        %v691 = vcombine.low %v640, %v672
        %v692 = vcombine.high %v640, %v672
        %v693 = vcombine.low %v649, %v681
        %v694 = vcombine.high %v649, %v681
        %v695 = vcombine.low %v656, %v688
        %v696 = vcombine.high %v656, %v688
        %v697 = vcombine.low %v354, %v358
        %v698 = vcombine.high %v354, %v358
        %v700 = vunpack.c.l.s4 1983009808
        %v701 = vunpack.c.0.s8 %v700
        %v702 = vlaneseq
        %v703 = vshrl.u32 %v702, 7
        %v704 = vsub.s32 %v701, %v703
        %v705 = vrot.slane %v697, %v704
        %v707 = vunpack.c.l.s4 1983009808
        %v708 = vunpack.c.0.s8 %v707
        %v709 = vlaneseq
        %v710 = vshrl.u32 %v709, 7
        %v711 = vsub.s32 %v708, %v710
        %v712 = vrot.slane %v698, %v711
        %v713 = vcombine.low %v356, %v360
        %v714 = vcombine.high %v356, %v360
        %v716 = vunpack.c.l.s4 1983009808
        %v717 = vunpack.c.0.s8 %v716
        %v718 = vlaneseq
        %v719 = vshrl.u32 %v718, 7
        %v720 = vsub.s32 %v717, %v719
        %v721 = vrot.slane %v713, %v720
        %v723 = vunpack.c.l.s4 1983009808
        %v724 = vunpack.c.0.s8 %v723
        %v725 = vlaneseq
        %v726 = vshrl.u32 %v725, 7
        %v727 = vsub.s32 %v724, %v726
        %v728 = vrot.slane %v714, %v727
        %v729 = vcombine.low %v362, %v366
        %v730 = vcombine.high %v362, %v366
        %v732 = vunpack.c.l.s4 1983009808
        %v733 = vunpack.c.0.s8 %v732
        %v734 = vlaneseq
        %v735 = vshrl.u32 %v734, 7
        %v736 = vsub.s32 %v733, %v735
        %v737 = vrot.slane %v729, %v736
        %v739 = vunpack.c.l.s4 1983009808
        %v740 = vunpack.c.0.s8 %v739
        %v741 = vlaneseq
        %v742 = vshrl.u32 %v741, 7
        %v743 = vsub.s32 %v740, %v742
        %v744 = vrot.slane %v730, %v743
        %v745 = vcombine.low %v364, %v368
        %v746 = vcombine.high %v364, %v368
        %v748 = vunpack.c.l.s4 1983009808
        %v749 = vunpack.c.0.s8 %v748
        %v750 = vlaneseq
        %v751 = vshrl.u32 %v750, 7
        %v752 = vsub.s32 %v749, %v751
        %v753 = vrot.slane %v745, %v752
        %v755 = vunpack.c.l.s4 1983009808
        %v756 = vunpack.c.0.s8 %v755
        %v757 = vlaneseq
        %v758 = vshrl.u32 %v757, 7
        %v759 = vsub.s32 %v756, %v758
        %v760 = vrot.slane %v746, %v759
        %v761 = vcombine.low %v705, %v721
        %v762 = vcombine.high %v705, %v721
        %v764 = vunpack.c.l.s4 1934713408
        %v765 = vunpack.c.0.s8 %v764
        %v766 = vlaneseq
        %v767 = vshrl.u32 %v766, 7
        %v768 = vsub.s32 %v765, %v767
        %v769 = vrot.slane %v761, %v768
        %v771 = vunpack.c.l.s4 1934713408
        %v772 = vunpack.c.0.s8 %v771
        %v773 = vlaneseq
        %v774 = vshrl.u32 %v773, 7
        %v775 = vsub.s32 %v772, %v774
        %v776 = vrot.slane %v762, %v775
        %v777 = vcombine.low %v712, %v728
        %v778 = vcombine.high %v712, %v728
        %v780 = vunpack.c.l.s4 1934713408
        %v781 = vunpack.c.0.s8 %v780
        %v782 = vlaneseq
        %v783 = vshrl.u32 %v782, 7
        %v784 = vsub.s32 %v781, %v783
        %v785 = vrot.slane %v777, %v784
        %v787 = vunpack.c.l.s4 1934713408
        %v788 = vunpack.c.0.s8 %v787
        %v789 = vlaneseq
        %v790 = vshrl.u32 %v789, 7
        %v791 = vsub.s32 %v788, %v790
        %v792 = vrot.slane %v778, %v791
        %v793 = vcombine.low %v737, %v753
        %v794 = vcombine.high %v737, %v753
        %v796 = vunpack.c.l.s4 1934713408
        %v797 = vunpack.c.0.s8 %v796
        %v798 = vlaneseq
        %v799 = vshrl.u32 %v798, 7
        %v800 = vsub.s32 %v797, %v799
        %v801 = vrot.slane %v793, %v800
        %v803 = vunpack.c.l.s4 1934713408
        %v804 = vunpack.c.0.s8 %v803
        %v805 = vlaneseq
        %v806 = vshrl.u32 %v805, 7
        %v807 = vsub.s32 %v804, %v806
        %v808 = vrot.slane %v794, %v807
        %v809 = vcombine.low %v744, %v760
        %v810 = vcombine.high %v744, %v760
        %v812 = vunpack.c.l.s4 1934713408
        %v813 = vunpack.c.0.s8 %v812
        %v814 = vlaneseq
        %v815 = vshrl.u32 %v814, 7
        %v816 = vsub.s32 %v813, %v815
        %v817 = vrot.slane %v809, %v816
        %v819 = vunpack.c.l.s4 1934713408
        %v820 = vunpack.c.0.s8 %v819
        %v821 = vlaneseq
        %v822 = vshrl.u32 %v821, 7
        %v823 = vsub.s32 %v820, %v822
        %v824 = vrot.slane %v810, %v823
        %v825 = vcombine.low %v769, %v801
        %v826 = vcombine.high %v769, %v801
        %v827 = vcombine.low %v776, %v808
        %v828 = vcombine.high %v776, %v808
        %v829 = vcombine.low %v785, %v817
        %v830 = vcombine.high %v785, %v817
        %v831 = vcombine.low %v792, %v824
        %v832 = vcombine.high %v792, %v824
        %834 = vrot.lane.b32.xlu0 %v690, 2
        %v835 = vpop.permute.xlu0 %834
        %838 = vrot.lane.b32.xlu0 %v691, 4
        %v839 = vpop.permute.xlu0 %838
        %842 = vrot.lane.b32.xlu0 %v692, 6
        %v843 = vpop.permute.xlu0 %842
        %846 = vrot.lane.b32.xlu0 %v693, 8
        %v847 = vpop.permute.xlu0 %846
        %850 = vrot.lane.b32.xlu0 %v694, 10
        %v851 = vpop.permute.xlu0 %850
        %854 = vrot.lane.b32.xlu0 %v695, 12
        %v855 = vpop.permute.xlu0 %854
        %858 = vrot.lane.b32.xlu0 %v696, 14
        %v859 = vpop.permute.xlu0 %858
        %862 = vrot.lane.b32.xlu0 %v825, 16
        %v863 = vpop.permute.xlu0 %862
        %866 = vrot.lane.b32.xlu0 %v826, 18
        %v867 = vpop.permute.xlu0 %866
        %870 = vrot.lane.b32.xlu0 %v827, 20
        %v871 = vpop.permute.xlu0 %870
        %874 = vrot.lane.b32.xlu0 %v828, 22
        %v875 = vpop.permute.xlu0 %874
        %878 = vrot.lane.b32.xlu0 %v829, 24
        %v879 = vpop.permute.xlu0 %878
        %882 = vrot.lane.b32.xlu0 %v830, 26
        %v883 = vpop.permute.xlu0 %882
        %886 = vrot.lane.b32.xlu0 %v831, 28
        %v887 = vpop.permute.xlu0 %886
        %890 = vrot.lane.b32.xlu0 %v832, 30
        %v891 = vpop.permute.xlu0 %890
        %vm893 = vcmask 15360
        %v894 = vsel %vm893, %v689, %v835
        %vm895 = vcmask 31744
        %v896 = vsel %vm895, %v894, %v839
        %vm897 = vcmask 48128
        %v898 = vsel %vm897, %v896, %v843
        %vm899 = vcmask 64512
        %v900 = vsel %vm899, %v898, %v847
        %vm901 = vcmask 80896
        %v902 = vsel %vm901, %v900, %v851
        %vm903 = vcmask 97280
        %v904 = vsel %vm903, %v902, %v855
        %vm905 = vcmask 113664
        %v906 = vsel %vm905, %v904, %v859
        %vm907 = vcmask 130048
        %v908 = vsel %vm907, %v906, %v863
        %vm909 = vcmask 146432
        %v910 = vsel %vm909, %v908, %v867
        %vm911 = vcmask 162816
        %v912 = vsel %vm911, %v910, %v871
        %vm913 = vcmask 179200
        %v914 = vsel %vm913, %v912, %v875
        %vm915 = vcmask 195584
        %v916 = vsel %vm915, %v914, %v879
        %vm917 = vcmask 211968
        %v918 = vsel %vm917, %v916, %v883
        %vm919 = vcmask 228352
        %v920 = vsel %vm919, %v918, %v887
        %vm921 = vcmask 244736
        %v922 = vsel %vm921, %v920, %v891
        %vm923 = vcmask 261120
        %924 = vst.msk [vmem:[%s159] sm:$0xff] %vm923, %v922
        %v925 = vcombine.low %v545, %v549
        %v926 = vcombine.high %v545, %v549
        %v928 = vunpack.c.l.s4 1983009808
        %v929 = vunpack.c.0.s8 %v928
        %v930 = vlaneseq
        %v931 = vshrl.u32 %v930, 7
        %v932 = vsub.s32 %v929, %v931
        %v933 = vrot.slane %v925, %v932
        %v935 = vunpack.c.l.s4 1983009808
        %v936 = vunpack.c.0.s8 %v935
        %v937 = vlaneseq
        %v938 = vshrl.u32 %v937, 7
        %v939 = vsub.s32 %v936, %v938
        %v940 = vrot.slane %v926, %v939
        %v941 = vcombine.low %v547, %v551
        %v942 = vcombine.high %v547, %v551
        %v944 = vunpack.c.l.s4 1983009808
        %v945 = vunpack.c.0.s8 %v944
        %v946 = vlaneseq
        %v947 = vshrl.u32 %v946, 7
        %v948 = vsub.s32 %v945, %v947
        %v949 = vrot.slane %v941, %v948
        %v951 = vunpack.c.l.s4 1983009808
        %v952 = vunpack.c.0.s8 %v951
        %v953 = vlaneseq
        %v954 = vshrl.u32 %v953, 7
        %v955 = vsub.s32 %v952, %v954
        %v956 = vrot.slane %v942, %v955
        %v957 = vcombine.low %v553, %v557
        %v958 = vcombine.high %v553, %v557
        %v960 = vunpack.c.l.s4 1983009808
        %v961 = vunpack.c.0.s8 %v960
        %v962 = vlaneseq
        %v963 = vshrl.u32 %v962, 7
        %v964 = vsub.s32 %v961, %v963
        %v965 = vrot.slane %v957, %v964
        %v967 = vunpack.c.l.s4 1983009808
        %v968 = vunpack.c.0.s8 %v967
        %v969 = vlaneseq
        %v970 = vshrl.u32 %v969, 7
        %v971 = vsub.s32 %v968, %v970
        %v972 = vrot.slane %v958, %v971
        %v973 = vcombine.low %v555, %v559
        %v974 = vcombine.high %v555, %v559
        %v976 = vunpack.c.l.s4 1983009808
        %v977 = vunpack.c.0.s8 %v976
        %v978 = vlaneseq
        %v979 = vshrl.u32 %v978, 7
        %v980 = vsub.s32 %v977, %v979
        %v981 = vrot.slane %v973, %v980
        %v983 = vunpack.c.l.s4 1983009808
        %v984 = vunpack.c.0.s8 %v983
        %v985 = vlaneseq
        %v986 = vshrl.u32 %v985, 7
        %v987 = vsub.s32 %v984, %v986
        %v988 = vrot.slane %v974, %v987
        %v989 = vcombine.low %v933, %v949
        %v990 = vcombine.high %v933, %v949
        %v992 = vunpack.c.l.s4 1934713408
        %v993 = vunpack.c.0.s8 %v992
        %v994 = vlaneseq
        %v995 = vshrl.u32 %v994, 7
        %v996 = vsub.s32 %v993, %v995
        %v997 = vrot.slane %v989, %v996
        %v999 = vunpack.c.l.s4 1934713408
        %v1000 = vunpack.c.0.s8 %v999
        %v1001 = vlaneseq
        %v1002 = vshrl.u32 %v1001, 7
        %v1003 = vsub.s32 %v1000, %v1002
        %v1004 = vrot.slane %v990, %v1003
        %v1005 = vcombine.low %v940, %v956
        %v1006 = vcombine.high %v940, %v956
        %v1008 = vunpack.c.l.s4 1934713408
        %v1009 = vunpack.c.0.s8 %v1008
        %v1010 = vlaneseq
        %v1011 = vshrl.u32 %v1010, 7
        %v1012 = vsub.s32 %v1009, %v1011
        %v1013 = vrot.slane %v1005, %v1012
        %v1015 = vunpack.c.l.s4 1934713408
        %v1016 = vunpack.c.0.s8 %v1015
        %v1017 = vlaneseq
        %v1018 = vshrl.u32 %v1017, 7
        %v1019 = vsub.s32 %v1016, %v1018
        %v1020 = vrot.slane %v1006, %v1019
        %v1021 = vcombine.low %v965, %v981
        %v1022 = vcombine.high %v965, %v981
        %v1024 = vunpack.c.l.s4 1934713408
        %v1025 = vunpack.c.0.s8 %v1024
        %v1026 = vlaneseq
        %v1027 = vshrl.u32 %v1026, 7
        %v1028 = vsub.s32 %v1025, %v1027
        %v1029 = vrot.slane %v1021, %v1028
        %v1031 = vunpack.c.l.s4 1934713408
        %v1032 = vunpack.c.0.s8 %v1031
        %v1033 = vlaneseq
        %v1034 = vshrl.u32 %v1033, 7
        %v1035 = vsub.s32 %v1032, %v1034
        %v1036 = vrot.slane %v1022, %v1035
        %v1037 = vcombine.low %v972, %v988
        %v1038 = vcombine.high %v972, %v988
        %v1040 = vunpack.c.l.s4 1934713408
        %v1041 = vunpack.c.0.s8 %v1040
        %v1042 = vlaneseq
        %v1043 = vshrl.u32 %v1042, 7
        %v1044 = vsub.s32 %v1041, %v1043
        %v1045 = vrot.slane %v1037, %v1044
        %v1047 = vunpack.c.l.s4 1934713408
        %v1048 = vunpack.c.0.s8 %v1047
        %v1049 = vlaneseq
        %v1050 = vshrl.u32 %v1049, 7
        %v1051 = vsub.s32 %v1048, %v1050
        %v1052 = vrot.slane %v1038, %v1051
        %v1053 = vcombine.low %v997, %v1029
        %v1054 = vcombine.high %v997, %v1029
        %v1055 = vcombine.low %v1004, %v1036
        %v1056 = vcombine.high %v1004, %v1036
        %v1057 = vcombine.low %v1013, %v1045
        %v1058 = vcombine.high %v1013, %v1045
        %v1059 = vcombine.low %v1020, %v1052
        %v1060 = vcombine.high %v1020, %v1052
        %v1061 = vcombine.low %v546, %v550
        %v1062 = vcombine.high %v546, %v550
        %v1064 = vunpack.c.l.s4 1983009808
        %v1065 = vunpack.c.0.s8 %v1064
        %v1066 = vlaneseq
        %v1067 = vshrl.u32 %v1066, 7
        %v1068 = vsub.s32 %v1065, %v1067
        %v1069 = vrot.slane %v1061, %v1068
        %v1071 = vunpack.c.l.s4 1983009808
        %v1072 = vunpack.c.0.s8 %v1071
        %v1073 = vlaneseq
        %v1074 = vshrl.u32 %v1073, 7
        %v1075 = vsub.s32 %v1072, %v1074
        %v1076 = vrot.slane %v1062, %v1075
        %v1077 = vcombine.low %v548, %v552
        %v1078 = vcombine.high %v548, %v552
        %v1080 = vunpack.c.l.s4 1983009808
        %v1081 = vunpack.c.0.s8 %v1080
        %v1082 = vlaneseq
        %v1083 = vshrl.u32 %v1082, 7
        %v1084 = vsub.s32 %v1081, %v1083
        %v1085 = vrot.slane %v1077, %v1084
        %v1087 = vunpack.c.l.s4 1983009808
        %v1088 = vunpack.c.0.s8 %v1087
        %v1089 = vlaneseq
        %v1090 = vshrl.u32 %v1089, 7
        %v1091 = vsub.s32 %v1088, %v1090
        %v1092 = vrot.slane %v1078, %v1091
        %v1093 = vcombine.low %v554, %v558
        %v1094 = vcombine.high %v554, %v558
        %v1096 = vunpack.c.l.s4 1983009808
        %v1097 = vunpack.c.0.s8 %v1096
        %v1098 = vlaneseq
        %v1099 = vshrl.u32 %v1098, 7
        %v1100 = vsub.s32 %v1097, %v1099
        %v1101 = vrot.slane %v1093, %v1100
        %v1103 = vunpack.c.l.s4 1983009808
        %v1104 = vunpack.c.0.s8 %v1103
        %v1105 = vlaneseq
        %v1106 = vshrl.u32 %v1105, 7
        %v1107 = vsub.s32 %v1104, %v1106
        %v1108 = vrot.slane %v1094, %v1107
        %v1109 = vcombine.low %v556, %v560
        %v1110 = vcombine.high %v556, %v560
        %v1112 = vunpack.c.l.s4 1983009808
        %v1113 = vunpack.c.0.s8 %v1112
        %v1114 = vlaneseq
        %v1115 = vshrl.u32 %v1114, 7
        %v1116 = vsub.s32 %v1113, %v1115
        %v1117 = vrot.slane %v1109, %v1116
        %v1119 = vunpack.c.l.s4 1983009808
        %v1120 = vunpack.c.0.s8 %v1119
        %v1121 = vlaneseq
        %v1122 = vshrl.u32 %v1121, 7
        %v1123 = vsub.s32 %v1120, %v1122
        %v1124 = vrot.slane %v1110, %v1123
        %v1125 = vcombine.low %v1069, %v1085
        %v1126 = vcombine.high %v1069, %v1085
        %v1128 = vunpack.c.l.s4 1934713408
        %v1129 = vunpack.c.0.s8 %v1128
        %v1130 = vlaneseq
        %v1131 = vshrl.u32 %v1130, 7
        %v1132 = vsub.s32 %v1129, %v1131
        %v1133 = vrot.slane %v1125, %v1132
        %v1135 = vunpack.c.l.s4 1934713408
        %v1136 = vunpack.c.0.s8 %v1135
        %v1137 = vlaneseq
        %v1138 = vshrl.u32 %v1137, 7
        %v1139 = vsub.s32 %v1136, %v1138
        %v1140 = vrot.slane %v1126, %v1139
        %v1141 = vcombine.low %v1076, %v1092
        %v1142 = vcombine.high %v1076, %v1092
        %v1144 = vunpack.c.l.s4 1934713408
        %v1145 = vunpack.c.0.s8 %v1144
        %v1146 = vlaneseq
        %v1147 = vshrl.u32 %v1146, 7
        %v1148 = vsub.s32 %v1145, %v1147
        %v1149 = vrot.slane %v1141, %v1148
        %v1151 = vunpack.c.l.s4 1934713408
        %v1152 = vunpack.c.0.s8 %v1151
        %v1153 = vlaneseq
        %v1154 = vshrl.u32 %v1153, 7
        %v1155 = vsub.s32 %v1152, %v1154
        %v1156 = vrot.slane %v1142, %v1155
        %v1157 = vcombine.low %v1101, %v1117
        %v1158 = vcombine.high %v1101, %v1117
        %v1160 = vunpack.c.l.s4 1934713408
        %v1161 = vunpack.c.0.s8 %v1160
        %v1162 = vlaneseq
        %v1163 = vshrl.u32 %v1162, 7
        %v1164 = vsub.s32 %v1161, %v1163
        %v1165 = vrot.slane %v1157, %v1164
        %v1167 = vunpack.c.l.s4 1934713408
        %v1168 = vunpack.c.0.s8 %v1167
        %v1169 = vlaneseq
        %v1170 = vshrl.u32 %v1169, 7
        %v1171 = vsub.s32 %v1168, %v1170
        %v1172 = vrot.slane %v1158, %v1171
        %v1173 = vcombine.low %v1108, %v1124
        %v1174 = vcombine.high %v1108, %v1124
        %v1176 = vunpack.c.l.s4 1934713408
        %v1177 = vunpack.c.0.s8 %v1176
        %v1178 = vlaneseq
        %v1179 = vshrl.u32 %v1178, 7
        %v1180 = vsub.s32 %v1177, %v1179
        %v1181 = vrot.slane %v1173, %v1180
        %v1183 = vunpack.c.l.s4 1934713408
        %v1184 = vunpack.c.0.s8 %v1183
        %v1185 = vlaneseq
        %v1186 = vshrl.u32 %v1185, 7
        %v1187 = vsub.s32 %v1184, %v1186
        %v1188 = vrot.slane %v1174, %v1187
        %v1189 = vcombine.low %v1133, %v1165
        %v1190 = vcombine.high %v1133, %v1165
        %v1191 = vcombine.low %v1140, %v1172
        %v1192 = vcombine.high %v1140, %v1172
        %v1193 = vcombine.low %v1149, %v1181
        %v1194 = vcombine.high %v1149, %v1181
        %v1195 = vcombine.low %v1156, %v1188
        %v1196 = vcombine.high %v1156, %v1188
        %1198 = vrot.lane.b32.xlu0 %v1054, 2
        %v1199 = vpop.permute.xlu0 %1198
        %1202 = vrot.lane.b32.xlu0 %v1055, 4
        %v1203 = vpop.permute.xlu0 %1202
        %1206 = vrot.lane.b32.xlu0 %v1056, 6
        %v1207 = vpop.permute.xlu0 %1206
        %1210 = vrot.lane.b32.xlu0 %v1057, 8
        %v1211 = vpop.permute.xlu0 %1210
        %1214 = vrot.lane.b32.xlu0 %v1058, 10
        %v1215 = vpop.permute.xlu0 %1214
        %1218 = vrot.lane.b32.xlu0 %v1059, 12
        %v1219 = vpop.permute.xlu0 %1218
        %1222 = vrot.lane.b32.xlu0 %v1060, 14
        %v1223 = vpop.permute.xlu0 %1222
        %1226 = vrot.lane.b32.xlu0 %v1189, 16
        %v1227 = vpop.permute.xlu0 %1226
        %1230 = vrot.lane.b32.xlu0 %v1190, 18
        %v1231 = vpop.permute.xlu0 %1230
        %1234 = vrot.lane.b32.xlu0 %v1191, 20
        %v1235 = vpop.permute.xlu0 %1234
        %1238 = vrot.lane.b32.xlu0 %v1192, 22
        %v1239 = vpop.permute.xlu0 %1238
        %1242 = vrot.lane.b32.xlu0 %v1193, 24
        %v1243 = vpop.permute.xlu0 %1242
        %1246 = vrot.lane.b32.xlu0 %v1194, 26
        %v1247 = vpop.permute.xlu0 %1246
        %1250 = vrot.lane.b32.xlu0 %v1195, 28
        %v1251 = vpop.permute.xlu0 %1250
        %1254 = vrot.lane.b32.xlu0 %v1196, 30
        %v1255 = vpop.permute.xlu0 %1254
        %v1257 = vsel %vm893, %v1053, %v1199
        %v1258 = vsel %vm895, %v1257, %v1203
        %v1259 = vsel %vm897, %v1258, %v1207
        %v1260 = vsel %vm899, %v1259, %v1211
        %v1261 = vsel %vm901, %v1260, %v1215
        %v1262 = vsel %vm903, %v1261, %v1219
        %v1263 = vsel %vm905, %v1262, %v1223
        %v1264 = vsel %vm907, %v1263, %v1227
        %v1265 = vsel %vm909, %v1264, %v1231
        %v1266 = vsel %vm911, %v1265, %v1235
        %v1267 = vsel %vm913, %v1266, %v1239
        %v1268 = vsel %vm915, %v1267, %v1243
        %v1269 = vsel %vm917, %v1268, %v1247
        %v1270 = vsel %vm919, %v1269, %v1251
        %v1271 = vsel %vm921, %v1270, %v1255
        %1273 = vrot.lane.b32.xlu0 %v1271, 32
        %v1274 = vpop.permute.xlu0 %1273
        %vm1276 = vcmask 523520
        %1277 = vst.msk [vmem:[%s159] sm:$0xff] %vm1276, %v1274
        %p1278 = scmp.lt.s32.totalorder %s19, 1
        %s1279 = scalar_select %p1278, %s19, 1
        %p1280 = scmp.lt.s32.totalorder %s20, 1
        %s1281 = scalar_select %p1280, %s20, 1
        %s1282 = smul.addr %s1279, 2
        %s1283 = sadd.s32 %s1281, %s1282
        %s1284 = smul.addr %s1283, 8
        %s1285 = scalar_lea.vmem %s1, %s1284
        // Predicated region
        $region29: #{_iwt_pallas.1} parent=23 // pred_check
          %p1286 = pneg %p75
        $region30: #{_iwt_pallas.1} parent=23 // pred_check_branch
          %1288 = sbr.rel (%p1286) target = $region32
        $region31: #{_iwt_pallas.1} parent=23 // pred_region
          _
        $region32: #{_iwt_pallas.1} parent=23 // pred_fallthru
          _
      $region24: #{_iwt_pallas.1} parent=5 // pred_fallthru
        _
      %p1289 = scmp.le.s32.totalorder 2, %s10
      // Predicated region
      $region33: #{_iwt_pallas.1} parent=5 // pred_check
        %p1290 = pneg %p1289
      $region34: #{_iwt_pallas.1} parent=5 // pred_check_branch
        %1292 = sbr.rel (%p1290) target = $region36
      $region35: #{_iwt_pallas.1} parent=5 // pred_region
        %s1293 = ssub.s32 %s10, 2
        // Predicated region
        $region37: #{_iwt_pallas.1} parent=35 // pred_check
          %p1294 = pneg %p81
        $region38: #{_iwt_pallas.1} parent=35 // pred_check_branch
          %1296 = sbr.rel (%p1294) target = $region40
        $region39: #{_iwt_pallas.1} parent=35 // pred_region
          %p1297 = scmp.lt.s32.totalorder %s21, 1
          %s1298 = scalar_select %p1297, %s21, 1
          %p1299 = scmp.lt.s32.totalorder %s22, 1
          %s1300 = scalar_select %p1299, %s22, 1
          %s1301 = smul.addr %s1298, 2
          %s1302 = sadd.s32 %s1300, %s1301
          %s1303 = smul.addr %s1302, 8
          %s1304 = scalar_lea.vmem %s1, %s1303
        $region40: #{_iwt_pallas.1} parent=35 // pred_fallthru
          _
      $region36: #{_iwt_pallas.1} parent=5 // pred_fallthru
        _
    $region6: #{_iwt_pallas.1} parent=1 // loop_footer
      %s14 = sadd.s32 1, %s10
    $region7: #{_iwt_pallas.1} parent=1 // loop_footer_branch
      %9 = sbr.rel target = $region3
    $region8: #{_iwt_pallas.1} parent=1 // loop_exit
      _
    %1305 = vsyncpa [#allocation3], 1
    %s1306 = scalar_lea.sflag [#allocation3], 1
    %1307 = vsyncpa %s1306, 1

// kernel: _iwt_pallas.1
$region0: #{_iwt_pallas.1}
  #allocation0 [shape = 'u32[]', space=smem, size = 0x4, offset = 0x4, fixed_abs, tag = 'smem constant byte address 0x4 - core index']
  #allocation1 [shape = 'u32[144,128]{1,0:T(1,128)}', space=vmem, size = 0x12000, scoped, tag = 'internal scratch']
  %s0 = inlined_call_operand.hbm [shape: f32[2,4,1,16,16], index: 0, kind: input, shape index: {}]
  %s1 = inlined_call_operand.vmem [shape: f32[2,1,16,16], index: 1, kind: output, shape index: {0}]
  %s2 = inlined_call_operand.vmem [shape: f32[2,1,16,16], index: 2, kind: output, shape index: {1}]
  %s3 = inlined_call_operand.vmem [shape: f32[2,1,16,16], index: 3, kind: output, shape index: {2}]
  %s4 = inlined_call_operand.vmem [shape: f32[2,1,16,16], index: 4, kind: output, shape index: {3}]
  %5 = xla_tuple %s1, %s2, %s3, %s4
  %s6 = sld [smem:[#allocation0]]
  $region65: #{_iwt_pallas.1} parent=0
    _
  %s8 = ssub.s32 1, %s6
  %s9 = scalar_select 0, %s8, %s6
  $region1: #{_iwt_pallas.1} parent=0
    #allocation2 [shape = 'u8[32768]{0}', space=vmem, size = 0x8000, scoped, tag = 'input window, operand 0']
    #allocation3 [shape = 's32[2]{0}', space=sflag, size = 0x8, scoped, tag = 'scoped memory for _iwt_pallas.1']
    %10 = vsyncpa [#allocation3], 0
    %s11 = scalar_lea.sflag [#allocation3], 1
    %12 = vsyncpa %s11, 0
    loop: start=0, step=1, limit=6
    $region2: #{_iwt_pallas.1} parent=1 // loop_pre_header
      _
    $region3: #{_iwt_pallas.1} parent=1 // loop_header
      %s14 = sphi 0, %s18
      %p15 = scmp.ge.s32.totalorder %s14, 6
      %s21 = sphi 0, %s33
      %s22 = sphi 0, %s29
      %s23 = sphi 0, %s21
      %s24 = sphi 0, %s22
      %s25 = sphi 0, %s23
      %s26 = sphi 0, %s24
      %s38 = sphi 0, %s40
      %s41 = sphi 0, %s38
      %s42 = sphi 0, %s41
      %s58 = sphi 0, %s42
      %s66 = sphi 0, %s68
      %s69 = sphi 0, %s66
      %s70 = sphi 0, %s69
      %s86 = sphi 0, %s70
      %s94 = sphi 0, %s96
      %s97 = sphi 0, %s94
      %s98 = sphi 0, %s97
      %s114 = sphi 0, %s98
      %s122 = sphi 0, %s124
      %s125 = sphi 0, %s122
      %s126 = sphi 0, %s125
      %s142 = sphi 0, %s126
      %s150 = sphi 0, %s152
      %s153 = sphi 0, %s150
      %s154 = sphi 0, %s153
      %s170 = sphi 0, %s154
    $region4: #{_iwt_pallas.1} parent=1 // loop_header_branch
      %17 = sbr.rel (%p15) target = $region8
    $region5: #{_iwt_pallas.1} parent=1 // loop_body
      %s19 = ssub.s32 %s14, 1
      %s20 = ssub.s32 %s14, 2
      %s27 = sadd.s32 1, %s22
      %p28 = scmp.ge.s32.totalorder %s27, 2
      %s29 = scalar_select %p28, 0, %s27
      %s30 = sadd.s32 1, %s21
      %s31 = scalar_select %p28, %s30, %s21
      %p32 = scmp.ge.s32.totalorder %s31, 2
      %s33 = scalar_select %p32, 0, %s31
      %s34 = ssub.s32 %s21, %s33
      %s35 = ssub.s32 %s22, %s29
      %s36 = sor.u32 %s34, %s35
      %p37 = scmp.eq.s32.totalorder %s36, 0
      %s39 = sadd.s32 %s38, 1
      %s40 = scalar_select %p37, %s38, %s39
      %p43 = pneg %p37
      %p44 = scmp.eq.s32.totalorder %s14, 3
      %p45 = por %p43, %p44
      %p46 = scmp.ne.s32.totalorder %s38, %s41
      %p47 = scmp.eq.s32.totalorder %s14, 0
      %p48 = por %p46, %p47
      %p49 = scmp.ne.s32.totalorder %s38, %s41
      %p50 = scmp.eq.s32.totalorder %s19, 3
      %p51 = por %p49, %p50
      %p52 = scmp.ne.s32.totalorder %s41, %s42
      %p53 = scmp.eq.s32.totalorder %s19, 0
      %p54 = por %p52, %p53
      %p55 = scmp.ne.s32.totalorder %s41, %s42
      %p56 = scmp.eq.s32.totalorder %s20, 3
      %p57 = por %p55, %p56
      %p59 = scmp.ne.s32.totalorder %s42, %s58
      %p60 = scmp.eq.s32.totalorder %s20, 0
      %p61 = por %p59, %p60
      %s62 = ssub.s32 %s21, %s33
      %s63 = ssub.s32 %s22, %s29
      %s64 = sor.u32 %s62, %s63
      %p65 = scmp.eq.s32.totalorder %s64, 0
      %s67 = sadd.s32 %s66, 1
      %s68 = scalar_select %p65, %s66, %s67
      %p71 = pneg %p65
      %p72 = scmp.eq.s32.totalorder %s14, 3
      %p73 = por %p71, %p72
      %p74 = scmp.ne.s32.totalorder %s66, %s69
      %p75 = scmp.eq.s32.totalorder %s14, 0
      %p76 = por %p74, %p75
      %p77 = scmp.ne.s32.totalorder %s66, %s69
      %p78 = scmp.eq.s32.totalorder %s19, 3
      %p79 = por %p77, %p78
      %p80 = scmp.ne.s32.totalorder %s69, %s70
      %p81 = scmp.eq.s32.totalorder %s19, 0
      %p82 = por %p80, %p81
      %p83 = scmp.ne.s32.totalorder %s69, %s70
      %p84 = scmp.eq.s32.totalorder %s20, 3
      %p85 = por %p83, %p84
      %p87 = scmp.ne.s32.totalorder %s70, %s86
      %p88 = scmp.eq.s32.totalorder %s20, 0
      %p89 = por %p87, %p88
      %s90 = ssub.s32 %s21, %s33
      %s91 = ssub.s32 %s22, %s29
      %s92 = sor.u32 %s90, %s91
      %p93 = scmp.eq.s32.totalorder %s92, 0
      %s95 = sadd.s32 %s94, 1
      %s96 = scalar_select %p93, %s94, %s95
      %p99 = pneg %p93
      %p100 = scmp.eq.s32.totalorder %s14, 3
      %p101 = por %p99, %p100
      %p102 = scmp.ne.s32.totalorder %s94, %s97
      %p103 = scmp.eq.s32.totalorder %s14, 0
      %p104 = por %p102, %p103
      %p105 = scmp.ne.s32.totalorder %s94, %s97
      %p106 = scmp.eq.s32.totalorder %s19, 3
      %p107 = por %p105, %p106
      %p108 = scmp.ne.s32.totalorder %s97, %s98
      %p109 = scmp.eq.s32.totalorder %s19, 0
      %p110 = por %p108, %p109
      %p111 = scmp.ne.s32.totalorder %s97, %s98
      %p112 = scmp.eq.s32.totalorder %s20, 3
      %p113 = por %p111, %p112
      %p115 = scmp.ne.s32.totalorder %s98, %s114
      %p116 = scmp.eq.s32.totalorder %s20, 0
      %p117 = por %p115, %p116
      %s118 = ssub.s32 %s21, %s33
      %s119 = ssub.s32 %s22, %s29
      %s120 = sor.u32 %s118, %s119
      %p121 = scmp.eq.s32.totalorder %s120, 0
      %s123 = sadd.s32 %s122, 1
      %s124 = scalar_select %p121, %s122, %s123
      %p127 = pneg %p121
      %p128 = scmp.eq.s32.totalorder %s14, 3
      %p129 = por %p127, %p128
      %p130 = scmp.ne.s32.totalorder %s122, %s125
      %p131 = scmp.eq.s32.totalorder %s14, 0
      %p132 = por %p130, %p131
      %p133 = scmp.ne.s32.totalorder %s122, %s125
      %p134 = scmp.eq.s32.totalorder %s19, 3
      %p135 = por %p133, %p134
      %p136 = scmp.ne.s32.totalorder %s125, %s126
      %p137 = scmp.eq.s32.totalorder %s19, 0
      %p138 = por %p136, %p137
      %p139 = scmp.ne.s32.totalorder %s125, %s126
      %p140 = scmp.eq.s32.totalorder %s20, 3
      %p141 = por %p139, %p140
      %p143 = scmp.ne.s32.totalorder %s126, %s142
      %p144 = scmp.eq.s32.totalorder %s20, 0
      %p145 = por %p143, %p144
      %s146 = ssub.s32 %s21, %s33
      %s147 = ssub.s32 %s22, %s29
      %s148 = sor.u32 %s146, %s147
      %p149 = scmp.eq.s32.totalorder %s148, 0
      %s151 = sadd.s32 %s150, 1
      %s152 = scalar_select %p149, %s150, %s151
      %p155 = pneg %p149
      %p156 = scmp.eq.s32.totalorder %s14, 3
      %p157 = por %p155, %p156
      %p158 = scmp.ne.s32.totalorder %s150, %s153
      %p159 = scmp.eq.s32.totalorder %s14, 0
      %p160 = por %p158, %p159
      %p161 = scmp.ne.s32.totalorder %s150, %s153
      %p162 = scmp.eq.s32.totalorder %s19, 3
      %p163 = por %p161, %p162
      %p164 = scmp.ne.s32.totalorder %s153, %s154
      %p165 = scmp.eq.s32.totalorder %s19, 0
      %p166 = por %p164, %p165
      %p167 = scmp.ne.s32.totalorder %s153, %s154
      %p168 = scmp.eq.s32.totalorder %s20, 3
      %p169 = por %p167, %p168
      %p171 = scmp.ne.s32.totalorder %s154, %s170
      %p172 = scmp.eq.s32.totalorder %s20, 0
      %p173 = por %p171, %p172
      %p174 = scmp.le.s32.totalorder 1, %s14
      %p175 = scmp.lt.s32.totalorder %s14, 5
      %p176 = pnand %p174, %p175
      %p177 = pneg %p176
      // Predicated region
      $region9: #{_iwt_pallas.1} parent=5 // pred_check
        _
      $region10: #{_iwt_pallas.1} parent=5 // pred_check_branch
        %179 = sbr.rel (%p176) target = $region12
      $region11: #{_iwt_pallas.1} parent=5 // pred_region
        %s180 = ssub.s32 %s14, 1
      $region12: #{_iwt_pallas.1} parent=5 // pred_fallthru
        _
      %p181 = scmp.lt.s32.totalorder %s14, 4
      // Predicated region
      $region13: #{_iwt_pallas.1} parent=5 // pred_check
        %p182 = pneg %p181
      $region14: #{_iwt_pallas.1} parent=5 // pred_check_branch
        %184 = sbr.rel (%p182) target = $region16
      $region15: #{_iwt_pallas.1} parent=5 // pred_region
        // Predicated region
        $region17: #{_iwt_pallas.1} parent=15 // pred_check
          %p185 = pneg %p48
        $region18: #{_iwt_pallas.1} parent=15 // pred_check_branch
          %187 = sbr.rel (%p185) target = $region20
        $region19: #{_iwt_pallas.1} parent=15 // pred_region
          %s188 = sand.u32 %s38, 1
          %s189 = scalar_lea.sflag [#allocation3], %s188
          %s190 = sand.u32 %s38, 1
          %s191 = smul.addr %s190, 32
          %s192 = scalar_lea.vmem [#allocation2], %s191
          %s194 = ssub.s32 512, 512
          %195 = vsyncadd %s189, %s194
          %s196 = smul.addr %s21, 8
          %s197 = sadd.s32 %s22, %s196
          %s198 = smul.addr %s197, 128
          %s199 = scalar_lea.hbm %s0, %s198
          %s200 = sshll.u32 %s192, 4
          %s201 = int_to_ptr.vmem [resolvable:$true] %s200
          %206 = dma.hbm_to_vmem [thread:$0]  %s199, 512, %s201, %s189, 256, 128, 8
        $region20: #{_iwt_pallas.1} parent=15 // pred_fallthru
          _
      $region16: #{_iwt_pallas.1} parent=5 // pred_fallthru
        _
      %p207 = scmp.le.s32.totalorder 1, %s14
      %p208 = scmp.lt.s32.totalorder %s14, 5
      %p209 = pnand %p207, %p208
      %p210 = pneg %p209
      // Predicated region
      $region21: #{_iwt_pallas.1} parent=5 // pred_check
        _
      $region22: #{_iwt_pallas.1} parent=5 // pred_check_branch
        %212 = sbr.rel (%p209) target = $region24
      $region23: #{_iwt_pallas.1} parent=5 // pred_region
        %s213 = ssub.s32 %s14, 1
        %s214 = sand.u32 %s41, 1
        %s215 = scalar_lea.sflag [#allocation3], %s214
        %s216 = sand.u32 %s41, 1
        %s217 = smul.addr %s216, 32
        %s218 = scalar_lea.vmem [#allocation2], %s217
        // Predicated region
        $region25: #{_iwt_pallas.1} parent=23 // pred_check
          %p219 = pneg %p54
        $region26: #{_iwt_pallas.1} parent=23 // pred_check_branch
          %221 = sbr.rel (%p219) target = $region28
        $region27: #{_iwt_pallas.1} parent=23 // pred_region
          %222 = dma.done %s215, 512
        $region28: #{_iwt_pallas.1} parent=23 // pred_fallthru
          _
        %s223 = sand.u32 %s41, 1
        %s224 = scalar_lea.sflag [#allocation3], %s223
        %s225 = sand.u32 %s41, 1
        %s226 = smul.addr %s225, 32
        %s227 = scalar_lea.vmem [#allocation2], %s226
        %p228 = pneg %p54
        %p229 = pneg %p51
        %p230 = pneg %p82
        %p231 = pneg %p79
        %p232 = scmp.lt.s32.totalorder %s23, 1
        %s233 = scalar_select %p232, %s23, 1
        %p234 = scmp.lt.s32.totalorder %s24, 1
        %s235 = scalar_select %p234, %s24, 1
        %s236 = smul.addr %s233, 2
        %s237 = sadd.s32 %s235, %s236
        %s238 = smul.addr %s237, 8
        %s239 = scalar_lea.vmem %s1, %s238
        %p240 = pneg %p110
        %p241 = pneg %p107
        %p242 = scmp.lt.s32.totalorder %s23, 1
        %s243 = scalar_select %p242, %s23, 1
        %p244 = scmp.lt.s32.totalorder %s24, 1
        %s245 = scalar_select %p244, %s24, 1
        %s246 = smul.addr %s243, 2
        %s247 = sadd.s32 %s245, %s246
        %s248 = smul.addr %s247, 8
        %s249 = scalar_lea.vmem %s2, %s248
        %p250 = pneg %p138
        %p251 = pneg %p135
        %p252 = scmp.lt.s32.totalorder %s23, 1
        %s253 = scalar_select %p252, %s23, 1
        %p254 = scmp.lt.s32.totalorder %s24, 1
        %s255 = scalar_select %p254, %s24, 1
        %s256 = smul.addr %s253, 2
        %s257 = sadd.s32 %s255, %s256
        %s258 = smul.addr %s257, 8
        %s259 = scalar_lea.vmem %s3, %s258
        %p260 = pneg %p166
        %p261 = pneg %p163
        %p262 = scmp.lt.s32.totalorder %s23, 1
        %s263 = scalar_select %p262, %s23, 1
        %p264 = scmp.lt.s32.totalorder %s24, 1
        %s265 = scalar_select %p264, %s24, 1
        %s266 = smul.addr %s263, 2
        %s267 = sadd.s32 %s265, %s266
        %s268 = smul.addr %s267, 8
        %s269 = scalar_lea.vmem %s4, %s268
        %p270 = scmp.lt.s32.totalorder %s23, 1
        %s271 = scalar_select %p270, %s23, 1
        %p272 = scmp.lt.s32.totalorder %s24, 1
        %s273 = scalar_select %p272, %s24, 1
        %s274 = smul.addr %s271, 2
        %s275 = sadd.s32 %s273, %s274
        %s276 = smul.addr %s275, 8
        %s277 = scalar_lea.vmem %s1, %s276
        %p278 = scmp.lt.s32.totalorder %s23, 1
        %s279 = scalar_select %p278, %s23, 1
        %p280 = scmp.lt.s32.totalorder %s24, 1
        %s281 = scalar_select %p280, %s24, 1
        %s282 = smul.addr %s279, 2
        %s283 = sadd.s32 %s281, %s282
        %s284 = smul.addr %s283, 8
        %s285 = scalar_lea.vmem %s2, %s284
        %p286 = scmp.lt.s32.totalorder %s23, 1
        %s287 = scalar_select %p286, %s23, 1
        %p288 = scmp.lt.s32.totalorder %s24, 1
        %s289 = scalar_select %p288, %s24, 1
        %s290 = smul.addr %s287, 2
        %s291 = sadd.s32 %s289, %s290
        %s292 = smul.addr %s291, 8
        %s293 = scalar_lea.vmem %s3, %s292
        %p294 = scmp.lt.s32.totalorder %s23, 1
        %s295 = scalar_select %p294, %s23, 1
        %p296 = scmp.lt.s32.totalorder %s24, 1
        %s297 = scalar_select %p296, %s24, 1
        %s298 = smul.addr %s295, 2
        %s299 = sadd.s32 %s297, %s298
        %s300 = smul.addr %s299, 8
        %s301 = scalar_lea.vmem %s4, %s300
        %v302 = vld [vmem:[%s218] sm:$0xff]
        %v303 = vld [vmem:[%s218 + $0x8] sm:$0xff]
        %v304 = vld [vmem:[%s218 + $0x10] sm:$0xff]
        %v305 = vld [vmem:[%s218 + $0x18] sm:$0xff]
        %v306 = vmul.f32 %v302, 0.5
        %v307 = vmul.f32 %v303, 0.5
        %v308 = vmul.f32 %v304, 0.5
        %v309 = vmul.f32 %v305, 0.5
        %v310 = vadd.f32 %v306, %v307
        %v311 = vsub.f32 %v306, %v307
        %v312 = vadd.f32 %v308, %v309
        %v313 = vsub.f32 %v308, %v309
        %v314 = vsub.f32 %v311, %v313
        %v315 = vadd.f32 %v311, %v313
        %v316 = vsub.f32 %v310, %v312
        %v317 = vadd.f32 %v310, %v312
        %vm318 = vcmask 130048
        %319 = vst.msk [vmem:[%s277] sm:$0xff] %vm318, %v314
        %320 = vst.msk [vmem:[%s285] sm:$0xff] %vm318, %v315
        %321 = vst.msk [vmem:[%s293] sm:$0xff] %vm318, %v316
        %322 = vst.msk [vmem:[%s301] sm:$0xff] %vm318, %v317
        %p323 = scmp.lt.s32.totalorder %s23, 1
        %s324 = scalar_select %p323, %s23, 1
        %p325 = scmp.lt.s32.totalorder %s24, 1
        %s326 = scalar_select %p325, %s24, 1
        %s327 = smul.addr %s324, 2
        %s328 = sadd.s32 %s326, %s327
        %s329 = smul.addr %s328, 8
        %s330 = scalar_lea.vmem %s1, %s329
        %p331 = scmp.lt.s32.totalorder %s23, 1
        %s332 = scalar_select %p331, %s23, 1
        %p333 = scmp.lt.s32.totalorder %s24, 1
        %s334 = scalar_select %p333, %s24, 1
        %s335 = smul.addr %s332, 2
        %s336 = sadd.s32 %s334, %s335
        %s337 = smul.addr %s336, 8
        %s338 = scalar_lea.vmem %s2, %s337
        %p339 = scmp.lt.s32.totalorder %s23, 1
        %s340 = scalar_select %p339, %s23, 1
        %p341 = scmp.lt.s32.totalorder %s24, 1
        %s342 = scalar_select %p341, %s24, 1
        %s343 = smul.addr %s340, 2
        %s344 = sadd.s32 %s342, %s343
        %s345 = smul.addr %s344, 8
        %s346 = scalar_lea.vmem %s3, %s345
        %p347 = scmp.lt.s32.totalorder %s23, 1
        %s348 = scalar_select %p347, %s23, 1
        %p349 = scmp.lt.s32.totalorder %s24, 1
        %s350 = scalar_select %p349, %s24, 1
        %s351 = smul.addr %s348, 2
        %s352 = sadd.s32 %s350, %s351
        %s353 = smul.addr %s352, 8
        %s354 = scalar_lea.vmem %s4, %s353
        // Predicated region
        $region29: #{_iwt_pallas.1} parent=23 // pred_check
          %p355 = pneg %p79
        $region30: #{_iwt_pallas.1} parent=23 // pred_check_branch
          %357 = sbr.rel (%p355) target = $region32
        $region31: #{_iwt_pallas.1} parent=23 // pred_region
          _
        $region32: #{_iwt_pallas.1} parent=23 // pred_fallthru
          _
        // Predicated region
        $region33: #{_iwt_pallas.1} parent=23 // pred_check
          %p358 = pneg %p107
        $region34: #{_iwt_pallas.1} parent=23 // pred_check_branch
          %360 = sbr.rel (%p358) target = $region36
        $region35: #{_iwt_pallas.1} parent=23 // pred_region
          _
        $region36: #{_iwt_pallas.1} parent=23 // pred_fallthru
          _
        // Predicated region
        $region37: #{_iwt_pallas.1} parent=23 // pred_check
          %p361 = pneg %p135
        $region38: #{_iwt_pallas.1} parent=23 // pred_check_branch
          %363 = sbr.rel (%p361) target = $region40
        $region39: #{_iwt_pallas.1} parent=23 // pred_region
          _
        $region40: #{_iwt_pallas.1} parent=23 // pred_fallthru
          _
        // Predicated region
        $region41: #{_iwt_pallas.1} parent=23 // pred_check
          %p364 = pneg %p163
        $region42: #{_iwt_pallas.1} parent=23 // pred_check_branch
          %366 = sbr.rel (%p364) target = $region44
        $region43: #{_iwt_pallas.1} parent=23 // pred_region
          _
        $region44: #{_iwt_pallas.1} parent=23 // pred_fallthru
          _
      $region24: #{_iwt_pallas.1} parent=5 // pred_fallthru
        _
      %p367 = scmp.le.s32.totalorder 2, %s14
      // Predicated region
      $region45: #{_iwt_pallas.1} parent=5 // pred_check
        %p368 = pneg %p367
      $region46: #{_iwt_pallas.1} parent=5 // pred_check_branch
        %370 = sbr.rel (%p368) target = $region48
      $region47: #{_iwt_pallas.1} parent=5 // pred_region
        %s371 = ssub.s32 %s14, 2
        // Predicated region
        $region49: #{_iwt_pallas.1} parent=47 // pred_check
          %p372 = pneg %p85
        $region50: #{_iwt_pallas.1} parent=47 // pred_check_branch
          %374 = sbr.rel (%p372) target = $region52
        $region51: #{_iwt_pallas.1} parent=47 // pred_region
          %p375 = scmp.lt.s32.totalorder %s25, 1
          %s376 = scalar_select %p375, %s25, 1
          %p377 = scmp.lt.s32.totalorder %s26, 1
          %s378 = scalar_select %p377, %s26, 1
          %s379 = smul.addr %s376, 2
          %s380 = sadd.s32 %s378, %s379
          %s381 = smul.addr %s380, 8
          %s382 = scalar_lea.vmem %s1, %s381
        $region52: #{_iwt_pallas.1} parent=47 // pred_fallthru
          _
        // Predicated region
        $region53: #{_iwt_pallas.1} parent=47 // pred_check
          %p383 = pneg %p113
        $region54: #{_iwt_pallas.1} parent=47 // pred_check_branch
          %385 = sbr.rel (%p383) target = $region56
        $region55: #{_iwt_pallas.1} parent=47 // pred_region
          %p386 = scmp.lt.s32.totalorder %s25, 1
          %s387 = scalar_select %p386, %s25, 1
          %p388 = scmp.lt.s32.totalorder %s26, 1
          %s389 = scalar_select %p388, %s26, 1
          %s390 = smul.addr %s387, 2
          %s391 = sadd.s32 %s389, %s390
          %s392 = smul.addr %s391, 8
          %s393 = scalar_lea.vmem %s2, %s392
        $region56: #{_iwt_pallas.1} parent=47 // pred_fallthru
          _
        // Predicated region
        $region57: #{_iwt_pallas.1} parent=47 // pred_check
          %p394 = pneg %p141
        $region58: #{_iwt_pallas.1} parent=47 // pred_check_branch
          %396 = sbr.rel (%p394) target = $region60
        $region59: #{_iwt_pallas.1} parent=47 // pred_region
          %p397 = scmp.lt.s32.totalorder %s25, 1
          %s398 = scalar_select %p397, %s25, 1
          %p399 = scmp.lt.s32.totalorder %s26, 1
          %s400 = scalar_select %p399, %s26, 1
          %s401 = smul.addr %s398, 2
          %s402 = sadd.s32 %s400, %s401
          %s403 = smul.addr %s402, 8
          %s404 = scalar_lea.vmem %s3, %s403
        $region60: #{_iwt_pallas.1} parent=47 // pred_fallthru
          _
        // Predicated region
        $region61: #{_iwt_pallas.1} parent=47 // pred_check
          %p405 = pneg %p169
        $region62: #{_iwt_pallas.1} parent=47 // pred_check_branch
          %407 = sbr.rel (%p405) target = $region64
        $region63: #{_iwt_pallas.1} parent=47 // pred_region
          %p408 = scmp.lt.s32.totalorder %s25, 1
          %s409 = scalar_select %p408, %s25, 1
          %p410 = scmp.lt.s32.totalorder %s26, 1
          %s411 = scalar_select %p410, %s26, 1
          %s412 = smul.addr %s409, 2
          %s413 = sadd.s32 %s411, %s412
          %s414 = smul.addr %s413, 8
          %s415 = scalar_lea.vmem %s4, %s414
        $region64: #{_iwt_pallas.1} parent=47 // pred_fallthru
          _
      $region48: #{_iwt_pallas.1} parent=5 // pred_fallthru
        _
    $region6: #{_iwt_pallas.1} parent=1 // loop_footer
      %s18 = sadd.s32 1, %s14
    $region7: #{_iwt_pallas.1} parent=1 // loop_footer_branch
      %13 = sbr.rel target = $region3
    $region8: #{_iwt_pallas.1} parent=1 // loop_exit
      _
    %416 = vsyncpa [#allocation3], 1
    %s417 = scalar_lea.sflag [#allocation3], 1
    %418 = vsyncpa %s417, 1

</llo_original>
